<compile_context>
chip_gen: v7x
topology: tpu7x:2x2x1
jax: 0.10.0
libtpu: 0.0.40
codegen_flags: <defaults>
</compile_context>

<pallas_src>
import functools

import jax
import jax.numpy as jnp
from jax.experimental import pallas as pl
from jax.experimental.pallas import tpu as pltpu

INPUT_DIM = 33
HIDDEN_DIM = 500
OUTPUT_DIM = 2
BN_EPS = 1e-5

# Lane-aligned (multiple-of-128) padded dims.
IN_P = 128
HID_P = 512
OUT_P = 128


def _round_up(n, m):
    return (n + m - 1) // m * m


def _mlp_kernel(x_ref, mask_ref,
                w1_ref, g1_ref, be1_ref,
                w2_ref, g2_ref, be2_ref,
                w3_ref, b3_ref,
                o_ref, *, batch):
    """Whole (padded) batch in one block. x/w refs are bf16; BN/sigmoid in f32."""
    inv_b = 1.0 / batch  # true batch size (padded rows contribute exact zeros)

    def bn_sigmoid(h, g_ref, be_ref):
        # Training-mode BatchNorm1d with biased batch statistics.
        # Sum-based stats: padded batch rows of h are exactly zero (inputs are
        # zero-padded / masked and the pre-BN bias is dropped), so dividing by
        # the true batch size gives exact full-batch statistics.
        mean = jnp.sum(h, axis=0, keepdims=True) * inv_b
        ex2 = jnp.sum(h * h, axis=0, keepdims=True) * inv_b
        var = ex2 - mean * mean
        # Folded affine: one mul + one add per element on the (B, H) block.
        scale = g_ref[...] * jax.lax.rsqrt(var + BN_EPS)
        shift = be_ref[...] - mean * scale
        y = h * scale + shift
        # sigmoid via a single EUP op: sigmoid(y) == 0.5*tanh(0.5*y) + 0.5
        return 0.5 * jnp.tanh(0.5 * y) + 0.5

    # fc1 (bias omitted: cancelled exactly by the BN mean subtraction).
    h = jnp.dot(x_ref[...], w1_ref[...], preferred_element_type=jnp.float32)
    a = bn_sigmoid(h, g1_ref, be1_ref)
    # TODO(synk): nn.Dropout(p=0.5) is stochastic in training mode; applied as
    # identity (eval-mode semantics) here.

    # Zero the padded batch rows (they became nonzero through BN's shift /
    # sigmoid) so the next layer's sum-based stats stay exact. mask is 1.0 for
    # real rows, 0.0 for padding (all-ones when batch is already a multiple
    # of 8, in which case this is a free no-op-ish mul).
    a = a * mask_ref[...]

    # fc2 (bias omitted, same cancellation).
    h = jnp.dot(a.astype(jnp.bfloat16), w2_ref[...],
                preferred_element_type=jnp.float32)
    a = bn_sigmoid(h, g2_ref, be2_ref)
    # No masking needed here: padded output rows are sliced off in the wrapper.

    # fc3 keeps its bias.
    o_ref[...] = (jnp.dot(a.astype(jnp.bfloat16), w3_ref[...],
                          preferred_element_type=jnp.float32) + b3_ref[...])


def feedforward(x, params):
    """x: (B, 33) f32.  params: PyTorch-shaped (transposed) parameters."""
    w1, b1, g1, be1, w2, b2, g2, be2, w3, b3 = params
    del b1, b2  # mathematically cancelled by training-mode BN mean subtraction
    batch = x.shape[0]
    padded_batch = _round_up(max(batch, 8), 8)

    def pad2(a, r, c):
        out = jnp.zeros((r, c), a.dtype)
        return out.at[: a.shape[0], : a.shape[1]].set(a)

    # Zero-pad to lane-aligned shapes; padded rows/cols of the *next* layer's
    # weights are zero, so the padded lanes never leak into the real outputs.
    xp = pad2(x, padded_batch, IN_P).astype(jnp.bfloat16)
    w1p = pad2(w1, IN_P, HID_P).astype(jnp.bfloat16)
    w2p = pad2(w2, HID_P, HID_P).astype(jnp.bfloat16)
    w3p = pad2(w3, HID_P, OUT_P).astype(jnp.bfloat16)
    g1p, be1p = pad2(g1, 1, HID_P), pad2(be1, 1, HID_P)
    g2p, be2p = pad2(g2, 1, HID_P), pad2(be2, 1, HID_P)
    b3p = pad2(b3, 1, OUT_P)
    # Row mask: 1.0 for real batch rows, 0.0 for padded rows.
    mask = pad2(jnp.ones((batch, 1), jnp.float32), padded_batch, 1)

    kernel = functools.partial(_mlp_kernel, batch=batch)
    vmem = lambda: pl.BlockSpec(memory_space=pltpu.MemorySpace.VMEM)

    out = pl.pallas_call(
        kernel,
        out_shape=jax.ShapeDtypeStruct((padded_batch, OUT_P), jnp.float32),
        in_specs=[vmem() for _ in range(10)],
        out_specs=vmem(),
        compiler_params=pltpu.CompilerParams(
            # Weights (~0.8 MB bf16) + full-batch activations; raise the scoped
            # limit explicitly (default is only 16 MiB on v5e).
            vmem_limit_bytes=32 * 1024 * 1024),
    )(xp, mask, w1p, g1p, be1p, w2p, g2p, be2p, w3p, b3p)

    return out[:batch, :OUTPUT_DIM]


def init_params(key):
    """Deterministic init matching the PyTorch layer shapes.

    Linear: uniform(-1/sqrt(fan_in), 1/sqrt(fan_in)); weights stored transposed
    ([in, out]) so layers compute y = x @ w + b. BatchNorm: gamma=1, beta=0.
    """
    k1, k2, k3 = jax.random.split(key, 3)

    def lin(k, fan_in, fan_out):
        bound = 1.0 / float(fan_in) ** 0.5
        kw, kb = jax.random.split(k)
        w = jax.random.uniform(kw, (fan_in, fan_out), jnp.float32, -bound, bound)
        b = jax.random.uniform(kb, (1, fan_out), jnp.float32, -bound, bound)
        return w, b

    w1, b1 = lin(k1, INPUT_DIM, HIDDEN_DIM)
    w2, b2 = lin(k2, HIDDEN_DIM, HIDDEN_DIM)
    w3, b3 = lin(k3, HIDDEN_DIM, OUTPUT_DIM)
    g1 = jnp.ones((1, HIDDEN_DIM), jnp.float32)
    be1 = jnp.zeros((1, HIDDEN_DIM), jnp.float32)
    g2 = jnp.ones((1, HIDDEN_DIM), jnp.float32)
    be2 = jnp.zeros((1, HIDDEN_DIM), jnp.float32)
    return (w1, b1, g1, be1, w2, b2, g2, be2, w3, b3)


def _reference_f32(x, params):
    """Exact PyTorch-equivalent forward (f32, biases included, true sigmoid)."""
    w1, b1, g1, be1, w2, b2, g2, be2, w3, b3 = params

    def bn(h, g, be):
        m = jnp.mean(h, axis=0, keepdims=True)
        v = jnp.mean((h - m) ** 2, axis=0, keepdims=True)
        return (h - m) * jax.lax.rsqrt(v + BN_EPS) * g + be

    h = jax.nn.sigmoid(bn(x @ w1 + b1, g1, be1))
    h = jax.nn.sigmoid(bn(h @ w2 + b2, g2, be2))
    return h @ w3 + b3


def _reference_matched(x, params):
    """Same numerics as the kernel (bf16 matmul operands, f32 accumulate)."""
    w1, b1, g1, be1, w2, b2, g2, be2, w3, b3 = params
    del b1, b2
    bf = lambda a: a.astype(jnp.bfloat16)

    def bn_sig(h, g, be):
        m = jnp.mean(h, axis=0, keepdims=True)
        v = jnp.mean(h * h, axis=0, keepdims=True) - m * m
        s = g * jax.lax.rsqrt(v + BN_EPS)
        return 0.5 * jnp.tanh(0.5 * (h * s + (be - m * s))) + 0.5

    h = jnp.dot(bf(x), bf(w1), preferred_element_type=jnp.float32)
    a = bn_sig(h, g1, be1)
    h = jnp.dot(bf(a), bf(w2), preferred_element_type=jnp.float32)
    a = bn_sig(h, g2, be2)
    return jnp.dot(bf(a), bf(w3), preferred_element_type=jnp.float32) + b3


if __name__ == "__main__":
    key = jax.random.PRNGKey(0)
    kx, kp = jax.random.split(key)

    batch = 8
    x = jax.random.normal(kx, (batch, INPUT_DIM), jnp.float32)
    params = init_params(kp)

    out = jax.block_until_ready(feedforward(x, params))
    assert out.shape == (batch, OUTPUT_DIM)

    ref_match = _reference_matched(x, params)   # identical numerics path
    ref_f32 = _reference_f32(x, params)         # true f32 module semantics
    assert jnp.allclose(out, ref_match, atol=1e-3, rtol=1e-3), \
        "kernel mismatch vs matched (bf16-matmul) reference"
    assert jnp.allclose(out, ref_f32, atol=2e-2, rtol=2e-2), \
        "kernel drifted too far from f32 reference"

    print("KERNEL_OK")
</pallas_src>

<mosaic_0001>
module attributes {stable_mosaic.version = 11 : i64} {
  func.func @_mlp_kernel(%arg0: memref<8x128xbf16, #tpu.memory_space<vmem>>, %arg1: memref<8x1xf32, #tpu.memory_space<vmem>>, %arg2: memref<128x512xbf16, #tpu.memory_space<vmem>>, %arg3: memref<1x512xf32, #tpu.memory_space<vmem>>, %arg4: memref<1x512xf32, #tpu.memory_space<vmem>>, %arg5: memref<512x512xbf16, #tpu.memory_space<vmem>>, %arg6: memref<1x512xf32, #tpu.memory_space<vmem>>, %arg7: memref<1x512xf32, #tpu.memory_space<vmem>>, %arg8: memref<512x128xbf16, #tpu.memory_space<vmem>>, %arg9: memref<1x128xf32, #tpu.memory_space<vmem>>, %arg10: memref<8x128xf32, #tpu.memory_space<vmem>>) attributes {dimension_semantics = [], scalar_prefetch = 0 : i64, scratch_operands = 0 : i64, tpu.core_type = #tpu.core_type<tc>} {
    %c0 = arith.constant 0 : index
    %c0_0 = arith.constant 0 : index
    %0 = vector.load %arg0[%c0, %c0_0] : memref<8x128xbf16, #tpu.memory_space<vmem>>, vector<8x128xbf16>
    %c0_1 = arith.constant 0 : index
    %c0_2 = arith.constant 0 : index
    %1 = vector.load %arg2[%c0_1, %c0_2] : memref<128x512xbf16, #tpu.memory_space<vmem>>, vector<128x512xbf16>
    %cst = arith.constant dense<0.000000e+00> : vector<8x512xf32>
    %2 = tpu.matmul %0, %1, %cst {dimension_numbers = #tpu.dot_dimension_numbers<[1], [0], [0], [1], [0, 0, 1, 1], [], []>} : vector<8x128xbf16>, vector<128x512xbf16>, vector<8x512xf32> -> vector<8x512xf32>
    %cst_3 = arith.constant dense<0.000000e+00> : vector<512xf32>
    %3 = vector.multi_reduction <add>, %2, %cst_3 [0] : vector<8x512xf32> to vector<512xf32>
    %4 = vector.shape_cast %3 : vector<512xf32> to vector<1x512xf32>
    %cst_4 = arith.constant 1.250000e-01 : f32
    %5 = vector.broadcast %cst_4 : f32 to vector<1x512xf32>
    %6 = arith.mulf %4, %5 : vector<1x512xf32>
    %7 = arith.mulf %2, %2 : vector<8x512xf32>
    %cst_5 = arith.constant dense<0.000000e+00> : vector<512xf32>
    %8 = vector.multi_reduction <add>, %7, %cst_5 [0] : vector<8x512xf32> to vector<512xf32>
    %9 = vector.shape_cast %8 : vector<512xf32> to vector<1x512xf32>
    %cst_6 = arith.constant 1.250000e-01 : f32
    %10 = vector.broadcast %cst_6 : f32 to vector<1x512xf32>
    %11 = arith.mulf %9, %10 : vector<1x512xf32>
    %12 = arith.mulf %6, %6 : vector<1x512xf32>
    %13 = arith.subf %11, %12 : vector<1x512xf32>
    %c0_7 = arith.constant 0 : index
    %c0_8 = arith.constant 0 : index
    %14 = vector.load %arg3[%c0_7, %c0_8] : memref<1x512xf32, #tpu.memory_space<vmem>>, vector<1x512xf32>
    %cst_9 = arith.constant 9.99999974E-6 : f32
    %15 = vector.broadcast %cst_9 : f32 to vector<1x512xf32>
    %16 = arith.addf %13, %15 : vector<1x512xf32>
    %17 = math.rsqrt %16 : vector<1x512xf32>
    %18 = arith.mulf %14, %17 : vector<1x512xf32>
    %c0_10 = arith.constant 0 : index
    %c0_11 = arith.constant 0 : index
    %19 = vector.load %arg4[%c0_10, %c0_11] : memref<1x512xf32, #tpu.memory_space<vmem>>, vector<1x512xf32>
    %20 = arith.mulf %6, %18 : vector<1x512xf32>
    %21 = arith.subf %19, %20 : vector<1x512xf32>
    %22 = vector.broadcast %18 : vector<1x512xf32> to vector<8x512xf32>
    %23 = arith.mulf %2, %22 : vector<8x512xf32>
    %24 = vector.broadcast %21 : vector<1x512xf32> to vector<8x512xf32>
    %25 = arith.addf %23, %24 : vector<8x512xf32>
    %cst_12 = arith.constant 5.000000e-01 : f32
    %26 = vector.broadcast %cst_12 : f32 to vector<8x512xf32>
    %27 = arith.mulf %26, %25 : vector<8x512xf32>
    %28 = math.tanh %27 : vector<8x512xf32>
    %cst_13 = arith.constant 5.000000e-01 : f32
    %29 = vector.broadcast %cst_13 : f32 to vector<8x512xf32>
    %30 = arith.mulf %29, %28 : vector<8x512xf32>
    %cst_14 = arith.constant 5.000000e-01 : f32
    %31 = vector.broadcast %cst_14 : f32 to vector<8x512xf32>
    %32 = arith.addf %30, %31 : vector<8x512xf32>
    %c0_15 = arith.constant 0 : index
    %c0_16 = arith.constant 0 : index
    %33 = vector.load %arg1[%c0_15, %c0_16] : memref<8x1xf32, #tpu.memory_space<vmem>>, vector<8x1xf32>
    %34 = vector.broadcast %33 : vector<8x1xf32> to vector<8x512xf32>
    %35 = arith.mulf %32, %34 : vector<8x512xf32>
    %36 = arith.truncf %35 : vector<8x512xf32> to vector<8x512xbf16>
    %c0_17 = arith.constant 0 : index
    %c0_18 = arith.constant 0 : index
    %37 = vector.load %arg5[%c0_17, %c0_18] : memref<512x512xbf16, #tpu.memory_space<vmem>>, vector<512x512xbf16>
    %cst_19 = arith.constant dense<0.000000e+00> : vector<8x512xf32>
    %38 = tpu.matmul %36, %37, %cst_19 {dimension_numbers = #tpu.dot_dimension_numbers<[1], [0], [0], [1], [0, 0, 1, 1], [], []>} : vector<8x512xbf16>, vector<512x512xbf16>, vector<8x512xf32> -> vector<8x512xf32>
    %cst_20 = arith.constant dense<0.000000e+00> : vector<512xf32>
    %39 = vector.multi_reduction <add>, %38, %cst_20 [0] : vector<8x512xf32> to vector<512xf32>
    %40 = vector.shape_cast %39 : vector<512xf32> to vector<1x512xf32>
    %cst_21 = arith.constant 1.250000e-01 : f32
    %41 = vector.broadcast %cst_21 : f32 to vector<1x512xf32>
    %42 = arith.mulf %40, %41 : vector<1x512xf32>
    %43 = arith.mulf %38, %38 : vector<8x512xf32>
    %cst_22 = arith.constant dense<0.000000e+00> : vector<512xf32>
    %44 = vector.multi_reduction <add>, %43, %cst_22 [0] : vector<8x512xf32> to vector<512xf32>
    %45 = vector.shape_cast %44 : vector<512xf32> to vector<1x512xf32>
    %cst_23 = arith.constant 1.250000e-01 : f32
    %46 = vector.broadcast %cst_23 : f32 to vector<1x512xf32>
    %47 = arith.mulf %45, %46 : vector<1x512xf32>
    %48 = arith.mulf %42, %42 : vector<1x512xf32>
    %49 = arith.subf %47, %48 : vector<1x512xf32>
    %c0_24 = arith.constant 0 : index
    %c0_25 = arith.constant 0 : index
    %50 = vector.load %arg6[%c0_24, %c0_25] : memref<1x512xf32, #tpu.memory_space<vmem>>, vector<1x512xf32>
    %cst_26 = arith.constant 9.99999974E-6 : f32
    %51 = vector.broadcast %cst_26 : f32 to vector<1x512xf32>
    %52 = arith.addf %49, %51 : vector<1x512xf32>
    %53 = math.rsqrt %52 : vector<1x512xf32>
    %54 = arith.mulf %50, %53 : vector<1x512xf32>
    %c0_27 = arith.constant 0 : index
    %c0_28 = arith.constant 0 : index
    %55 = vector.load %arg7[%c0_27, %c0_28] : memref<1x512xf32, #tpu.memory_space<vmem>>, vector<1x512xf32>
    %56 = arith.mulf %42, %54 : vector<1x512xf32>
    %57 = arith.subf %55, %56 : vector<1x512xf32>
    %58 = vector.broadcast %54 : vector<1x512xf32> to vector<8x512xf32>
    %59 = arith.mulf %38, %58 : vector<8x512xf32>
    %60 = vector.broadcast %57 : vector<1x512xf32> to vector<8x512xf32>
    %61 = arith.addf %59, %60 : vector<8x512xf32>
    %cst_29 = arith.constant 5.000000e-01 : f32
    %62 = vector.broadcast %cst_29 : f32 to vector<8x512xf32>
    %63 = arith.mulf %62, %61 : vector<8x512xf32>
    %64 = math.tanh %63 : vector<8x512xf32>
    %cst_30 = arith.constant 5.000000e-01 : f32
    %65 = vector.broadcast %cst_30 : f32 to vector<8x512xf32>
    %66 = arith.mulf %65, %64 : vector<8x512xf32>
    %cst_31 = arith.constant 5.000000e-01 : f32
    %67 = vector.broadcast %cst_31 : f32 to vector<8x512xf32>
    %68 = arith.addf %66, %67 : vector<8x512xf32>
    %69 = arith.truncf %68 : vector<8x512xf32> to vector<8x512xbf16>
    %c0_32 = arith.constant 0 : index
    %c0_33 = arith.constant 0 : index
    %70 = vector.load %arg8[%c0_32, %c0_33] : memref<512x128xbf16, #tpu.memory_space<vmem>>, vector<512x128xbf16>
    %cst_34 = arith.constant dense<0.000000e+00> : vector<8x128xf32>
    %71 = tpu.matmul %69, %70, %cst_34 {dimension_numbers = #tpu.dot_dimension_numbers<[1], [0], [0], [1], [0, 0, 1, 1], [], []>} : vector<8x512xbf16>, vector<512x128xbf16>, vector<8x128xf32> -> vector<8x128xf32>
    %c0_35 = arith.constant 0 : index
    %c0_36 = arith.constant 0 : index
    %72 = vector.load %arg9[%c0_35, %c0_36] : memref<1x128xf32, #tpu.memory_space<vmem>>, vector<1x128xf32>
    %73 = vector.broadcast %72 : vector<1x128xf32> to vector<8x128xf32>
    %74 = arith.addf %71, %73 : vector<8x128xf32>
    %c0_37 = arith.constant 0 : index
    %c0_38 = arith.constant 0 : index
    %75 = vector.load %arg10[%c0_37, %c0_38] : memref<8x128xf32, #tpu.memory_space<vmem>>, vector<8x128xf32>
    tpu.vector_store %arg10[%c0_37, %c0_38], %74 {strides = array<i32>} : memref<8x128xf32, #tpu.memory_space<vmem>>, vector<8x128xf32>,
    return
  }
}

</mosaic_0001>

<llo_original>
// kernel: tpu_custom_call.1
$region0: #{tpu_custom_call.1}
  #allocation0 [shape = 'u32[]', space=smem, size = 0x4, offset = 0x4, fixed_abs, tag = 'smem constant byte address 0x4 - core index']
  #allocation1 [shape = 'u32[144,128]{1,0:T(1,128)}', space=vmem, size = 0x12000, scoped, tag = 'internal scratch']
  %s0 = inlined_call_operand.vmem [shape: bf16[8,128], index: 0, kind: input, shape index: {}]
  %s1 = inlined_call_operand.vmem [shape: f32[8,1], index: 1, kind: input, shape index: {}]
  %s2 = inlined_call_operand.hbm [shape: bf16[128,512], index: 2, kind: input, shape index: {}]
  %s3 = inlined_call_operand.vmem [shape: f32[1,512], index: 3, kind: input, shape index: {}]
  %s4 = inlined_call_operand.vmem [shape: f32[1,512], index: 4, kind: input, shape index: {}]
  %s5 = inlined_call_operand.hbm [shape: bf16[512,512], index: 5, kind: input, shape index: {}]
  %s6 = inlined_call_operand.vmem [shape: f32[1,512], index: 6, kind: input, shape index: {}]
  %s7 = inlined_call_operand.vmem [shape: f32[1,512], index: 7, kind: input, shape index: {}]
  %s8 = inlined_call_operand.hbm [shape: bf16[512,128], index: 8, kind: input, shape index: {}]
  %s9 = inlined_call_operand.vmem [shape: f32[1,128], index: 9, kind: input, shape index: {}]
  %s10 = inlined_call_operand.hbm [shape: f32[8,128], index: 10, kind: output, shape index: {}]
  %s11 = sld [smem:[#allocation0]]
  $region62: #{tpu_custom_call.1} parent=0
    _
  %s13 = ssub.s32 1, %s11
  %s14 = scalar_select 0, %s13, %s11
  $region1: #{tpu_custom_call.1} parent=0
    #allocation2 [shape = 'u8[131072]{0}', space=vmem, size = 0x20000, scoped, tag = 'input window, operand 2, single buffered']
    #allocation3 [shape = 's32[1]{0}', space=sflag, size = 0x4, scoped, tag = 'scoped memory for tpu_custom_call.1']
    #allocation4 [shape = 's32[1]{0}', space=sflag, size = 0x4, scoped, tag = 'scoped memory for tpu_custom_call.1']
    #allocation5 [shape = 'u8[524288]{0}', space=vmem, size = 0x80000, scoped, tag = 'input window, operand 5, single buffered']
    #allocation6 [shape = 's32[1]{0}', space=sflag, size = 0x4, scoped, tag = 'scoped memory for tpu_custom_call.1']
    #allocation7 [shape = 'u8[131072]{0}', space=vmem, size = 0x20000, scoped, tag = 'input window, operand 8, single buffered']
    #allocation8 [shape = 'u8[4096]{0}', space=vmem, size = 0x1000, scoped, tag = 'output window, operand 0, single buffered']
    %15 = vsyncpa [#allocation3], 0
    %16 = vsyncpa [#allocation6], 0
    %17 = vsyncpa [#allocation4], 0
    // Predicated region
    $region2: #{tpu_custom_call.1} parent=1 // pred_check
      _
    $region3: #{tpu_custom_call.1} parent=1 // pred_check_branch
      %19 = sbr.rel (0) target = $region5
    $region4: #{tpu_custom_call.1} parent=1 // pred_region
      _
    $region5: #{tpu_custom_call.1} parent=1 // pred_fallthru
      _
    // Predicated region
    $region6: #{tpu_custom_call.1} parent=1 // pred_check
      _
    $region7: #{tpu_custom_call.1} parent=1 // pred_check_branch
      %21 = sbr.rel (0) target = $region9
    $region8: #{tpu_custom_call.1} parent=1 // pred_region
      _
    $region9: #{tpu_custom_call.1} parent=1 // pred_fallthru
      _
    // Predicated region
    $region10: #{tpu_custom_call.1} parent=1 // pred_check
      _
    $region11: #{tpu_custom_call.1} parent=1 // pred_check_branch
      %23 = sbr.rel (0) target = $region13
    $region12: #{tpu_custom_call.1} parent=1 // pred_region
      %s25 = ssub.s32 4096, 4096
      %26 = vsyncadd [#allocation3], %s25
      %s27 = sshll.u32 [#allocation2], 4
      %s28 = int_to_ptr.vmem [resolvable:$true] %s27
      %33 = dma.hbm_to_vmem [thread:$0]  %s2, 4096, %s28, [#allocation3], 256, 256, 16
    $region13: #{tpu_custom_call.1} parent=1 // pred_fallthru
      _
    // Predicated region
    $region14: #{tpu_custom_call.1} parent=1 // pred_check
      _
    $region15: #{tpu_custom_call.1} parent=1 // pred_check_branch
      %35 = sbr.rel (0) target = $region17
    $region16: #{tpu_custom_call.1} parent=1 // pred_region
      _
    $region17: #{tpu_custom_call.1} parent=1 // pred_fallthru
      _
    // Predicated region
    $region18: #{tpu_custom_call.1} parent=1 // pred_check
      _
    $region19: #{tpu_custom_call.1} parent=1 // pred_check_branch
      %37 = sbr.rel (0) target = $region21
    $region20: #{tpu_custom_call.1} parent=1 // pred_region
      _
    $region21: #{tpu_custom_call.1} parent=1 // pred_fallthru
      _
    // Predicated region
    $region22: #{tpu_custom_call.1} parent=1 // pred_check
      _
    $region23: #{tpu_custom_call.1} parent=1 // pred_check_branch
      %39 = sbr.rel (0) target = $region25
    $region24: #{tpu_custom_call.1} parent=1 // pred_region
      %s41 = ssub.s32 16384, 16384
      %42 = vsyncadd [#allocation6], %s41
      %s43 = sshll.u32 [#allocation5], 4
      %s44 = int_to_ptr.vmem [resolvable:$true] %s43
      %49 = dma.hbm_to_vmem [thread:$0]  %s5, 16384, %s44, [#allocation6], 256, 256, 16
    $region25: #{tpu_custom_call.1} parent=1 // pred_fallthru
      _
    // Predicated region
    $region26: #{tpu_custom_call.1} parent=1 // pred_check
      _
    $region27: #{tpu_custom_call.1} parent=1 // pred_check_branch
      %51 = sbr.rel (0) target = $region29
    $region28: #{tpu_custom_call.1} parent=1 // pred_region
      _
    $region29: #{tpu_custom_call.1} parent=1 // pred_fallthru
      _
    // Predicated region
    $region30: #{tpu_custom_call.1} parent=1 // pred_check
      _
    $region31: #{tpu_custom_call.1} parent=1 // pred_check_branch
      %53 = sbr.rel (0) target = $region33
    $region32: #{tpu_custom_call.1} parent=1 // pred_region
      _
    $region33: #{tpu_custom_call.1} parent=1 // pred_fallthru
      _
    // Predicated region
    $region34: #{tpu_custom_call.1} parent=1 // pred_check
      _
    $region35: #{tpu_custom_call.1} parent=1 // pred_check_branch
      %55 = sbr.rel (0) target = $region37
    $region36: #{tpu_custom_call.1} parent=1 // pred_region
      %s57 = ssub.s32 4096, 4096
      %58 = vsyncadd [#allocation6], %s57
      %s59 = sshll.u32 [#allocation7], 4
      %s60 = int_to_ptr.vmem [resolvable:$true] %s59
      %65 = dma.hbm_to_vmem [thread:$0]  %s8, 4096, %s60, [#allocation6], 64, 64, 4
    $region37: #{tpu_custom_call.1} parent=1 // pred_fallthru
      _
    // Predicated region
    $region38: #{tpu_custom_call.1} parent=1 // pred_check
      _
    $region39: #{tpu_custom_call.1} parent=1 // pred_check_branch
      %67 = sbr.rel (0) target = $region41
    $region40: #{tpu_custom_call.1} parent=1 // pred_region
      _
    $region41: #{tpu_custom_call.1} parent=1 // pred_fallthru
      _
    // Predicated region
    $region42: #{tpu_custom_call.1} parent=1 // pred_check
      _
    $region43: #{tpu_custom_call.1} parent=1 // pred_check_branch
      %69 = sbr.rel (0) target = $region45
    $region44: #{tpu_custom_call.1} parent=1 // pred_region
      %70 = dma.done [#allocation3], 4096
    $region45: #{tpu_custom_call.1} parent=1 // pred_fallthru
      _
    // Predicated region
    $region46: #{tpu_custom_call.1} parent=1 // pred_check
      _
    $region47: #{tpu_custom_call.1} parent=1 // pred_check_branch
      %72 = sbr.rel (0) target = $region49
    $region48: #{tpu_custom_call.1} parent=1 // pred_region
      %73 = dma.done [#allocation6], 16384
    $region49: #{tpu_custom_call.1} parent=1 // pred_fallthru
      _
    // Predicated region
    $region50: #{tpu_custom_call.1} parent=1 // pred_check
      _
    $region51: #{tpu_custom_call.1} parent=1 // pred_check_branch
      %75 = sbr.rel (0) target = $region53
    $region52: #{tpu_custom_call.1} parent=1 // pred_region
      %76 = dma.done [#allocation6], 4096
    $region53: #{tpu_custom_call.1} parent=1 // pred_fallthru
      _
    %v78 = vld [vmem:[%s0] sm:$0xf]
    %v79 = vld [vmem:[#allocation2] sm:$0xff]
    %v80 = vld [vmem:[#allocation2 + $0x8] sm:$0xff]
    %v81 = vld [vmem:[#allocation2 + $0x10] sm:$0xff]
    %v82 = vld [vmem:[#allocation2 + $0x18] sm:$0xff]
    %v83 = vld [vmem:[#allocation2 + $0x20] sm:$0xff]
    %v84 = vld [vmem:[#allocation2 + $0x28] sm:$0xff]
    %v85 = vld [vmem:[#allocation2 + $0x30] sm:$0xff]
    %v86 = vld [vmem:[#allocation2 + $0x38] sm:$0xff]
    %v87 = vld [vmem:[#allocation2 + $0x40] sm:$0xff]
    %v88 = vld [vmem:[#allocation2 + $0x48] sm:$0xff]
    %v89 = vld [vmem:[#allocation2 + $0x50] sm:$0xff]
    %v90 = vld [vmem:[#allocation2 + $0x58] sm:$0xff]
    %v91 = vld [vmem:[#allocation2 + $0x60] sm:$0xff]
    %v92 = vld [vmem:[#allocation2 + $0x68] sm:$0xff]
    %v93 = vld [vmem:[#allocation2 + $0x70] sm:$0xff]
    %v94 = vld [vmem:[#allocation2 + $0x78] sm:$0xff]
    %v95 = vld [vmem:[#allocation2 + $0x80] sm:$0xff]
    %v96 = vld [vmem:[#allocation2 + $0x88] sm:$0xff]
    %v97 = vld [vmem:[#allocation2 + $0x90] sm:$0xff]
    %v98 = vld [vmem:[#allocation2 + $0x98] sm:$0xff]
    %v99 = vld [vmem:[#allocation2 + $0xa0] sm:$0xff]
    %v100 = vld [vmem:[#allocation2 + $0xa8] sm:$0xff]
    %v101 = vld [vmem:[#allocation2 + $0xb0] sm:$0xff]
    %v102 = vld [vmem:[#allocation2 + $0xb8] sm:$0xff]
    %v103 = vld [vmem:[#allocation2 + $0xc0] sm:$0xff]
    %v104 = vld [vmem:[#allocation2 + $0xc8] sm:$0xff]
    %v105 = vld [vmem:[#allocation2 + $0xd0] sm:$0xff]
    %v106 = vld [vmem:[#allocation2 + $0xd8] sm:$0xff]
    %v107 = vld [vmem:[#allocation2 + $0xe0] sm:$0xff]
    %v108 = vld [vmem:[#allocation2 + $0xe8] sm:$0xff]
    %v109 = vld [vmem:[#allocation2 + $0xf0] sm:$0xff]
    %v110 = vld [vmem:[#allocation2 + $0xf8] sm:$0xff]
    %v143 = vunpack.c.l.b16 %v79
    %v144 = vunpack.c.h.b16 %v79
    %v145 = vunpack.c.l.b16 %v80
    %v146 = vunpack.c.h.b16 %v80
    %v147 = vunpack.c.l.b16 %v81
    %v148 = vunpack.c.h.b16 %v81
    %v149 = vunpack.c.l.b16 %v82
    %v150 = vunpack.c.h.b16 %v82
    %v151 = vunpack.c.l.b16 %v83
    %v152 = vunpack.c.h.b16 %v83
    %v153 = vunpack.c.l.b16 %v84
    %v154 = vunpack.c.h.b16 %v84
    %v155 = vunpack.c.l.b16 %v85
    %v156 = vunpack.c.h.b16 %v85
    %v157 = vunpack.c.l.b16 %v86
    %v158 = vunpack.c.h.b16 %v86
    %v159 = vunpack.c.l.b16 %v87
    %v160 = vunpack.c.h.b16 %v87
    %v161 = vunpack.c.l.b16 %v88
    %v162 = vunpack.c.h.b16 %v88
    %v163 = vunpack.c.l.b16 %v89
    %v164 = vunpack.c.h.b16 %v89
    %v165 = vunpack.c.l.b16 %v90
    %v166 = vunpack.c.h.b16 %v90
    %v167 = vunpack.c.l.b16 %v91
    %v168 = vunpack.c.h.b16 %v91
    %v169 = vunpack.c.l.b16 %v92
    %v170 = vunpack.c.h.b16 %v92
    %v171 = vunpack.c.l.b16 %v93
    %v172 = vunpack.c.h.b16 %v93
    %v173 = vunpack.c.l.b16 %v94
    %v174 = vunpack.c.h.b16 %v94
    %v175 = vunpack.c.l.b16 %v95
    %v176 = vunpack.c.h.b16 %v95
    %v177 = vunpack.c.l.b16 %v96
    %v178 = vunpack.c.h.b16 %v96
    %v179 = vunpack.c.l.b16 %v97
    %v180 = vunpack.c.h.b16 %v97
    %v181 = vunpack.c.l.b16 %v98
    %v182 = vunpack.c.h.b16 %v98
    %v183 = vunpack.c.l.b16 %v99
    %v184 = vunpack.c.h.b16 %v99
    %v185 = vunpack.c.l.b16 %v100
    %v186 = vunpack.c.h.b16 %v100
    %v187 = vunpack.c.l.b16 %v101
    %v188 = vunpack.c.h.b16 %v101
    %v189 = vunpack.c.l.b16 %v102
    %v190 = vunpack.c.h.b16 %v102
    %v191 = vunpack.c.l.b16 %v103
    %v192 = vunpack.c.h.b16 %v103
    %v193 = vunpack.c.l.b16 %v104
    %v194 = vunpack.c.h.b16 %v104
    %v195 = vunpack.c.l.b16 %v105
    %v196 = vunpack.c.h.b16 %v105
    %v197 = vunpack.c.l.b16 %v106
    %v198 = vunpack.c.h.b16 %v106
    %v199 = vunpack.c.l.b16 %v107
    %v200 = vunpack.c.h.b16 %v107
    %v201 = vunpack.c.l.b16 %v108
    %v202 = vunpack.c.h.b16 %v108
    %v203 = vunpack.c.l.b16 %v109
    %v204 = vunpack.c.h.b16 %v109
    %v205 = vunpack.c.l.b16 %v110
    %v206 = vunpack.c.h.b16 %v110
    %v207 = vpack.c.b16 %v147, %v143
    %v208 = vpack.c.b16 %v148, %v144
    %v209 = vpack.c.b16 %v149, %v145
    %v210 = vpack.c.b16 %v150, %v146
    %v211 = vpack.c.b16 %v155, %v151
    %v212 = vpack.c.b16 %v156, %v152
    %v213 = vpack.c.b16 %v157, %v153
    %v214 = vpack.c.b16 %v158, %v154
    %v215 = vpack.c.b16 %v163, %v159
    %v216 = vpack.c.b16 %v164, %v160
    %v217 = vpack.c.b16 %v165, %v161
    %v218 = vpack.c.b16 %v166, %v162
    %v219 = vpack.c.b16 %v171, %v167
    %v220 = vpack.c.b16 %v172, %v168
    %v221 = vpack.c.b16 %v173, %v169
    %v222 = vpack.c.b16 %v174, %v170
    %v223 = vpack.c.b16 %v179, %v175
    %v224 = vpack.c.b16 %v180, %v176
    %v225 = vpack.c.b16 %v181, %v177
    %v226 = vpack.c.b16 %v182, %v178
    %v227 = vpack.c.b16 %v187, %v183
    %v228 = vpack.c.b16 %v188, %v184
    %v229 = vpack.c.b16 %v189, %v185
    %v230 = vpack.c.b16 %v190, %v186
    %v231 = vpack.c.b16 %v195, %v191
    %v232 = vpack.c.b16 %v196, %v192
    %v233 = vpack.c.b16 %v197, %v193
    %v234 = vpack.c.b16 %v198, %v194
    %v235 = vpack.c.b16 %v203, %v199
    %v236 = vpack.c.b16 %v204, %v200
    %v237 = vpack.c.b16 %v205, %v201
    %v238 = vpack.c.b16 %v206, %v202
    %271 = vmatprep.subr.bf16.mxu0 %v208
    %272 = vmatpush1.bf16.msra.mxu0 %v207
    %273 = vmatprep.subr.bf16.mxu0 %v212
    %274 = vmatpush1.bf16.msra.mxu0 %v211
    %275 = vmatprep.subr.bf16.mxu0 %v216
    %276 = vmatpush1.bf16.msra.mxu0 %v215
    %277 = vmatprep.subr.bf16.mxu0 %v220
    %278 = vmatpush1.bf16.msra.mxu0 %v219
    %279 = vmatprep.subr.bf16.mxu0 %v224
    %280 = vmatpush1.bf16.msra.mxu0 %v223
    %281 = vmatprep.subr.bf16.mxu0 %v228
    %282 = vmatpush1.bf16.msra.mxu0 %v227
    %283 = vmatprep.subr.bf16.mxu0 %v232
    %284 = vmatpush1.bf16.msra.mxu0 %v231
    %285 = vmatprep.subr.bf16.mxu0 %v236
    %286 = vmatpush1.bf16.msra.mxu0 %v235
    %287 = vmatprep.subr.bf16.mxu0 0
    %288 = vmatpush1.bf16.msra.mxu0 0
    %289 = vmatprep.subr.bf16.mxu0 0
    %290 = vmatpush1.bf16.msra.mxu0 0
    %291 = vmatprep.subr.bf16.mxu0 0
    %292 = vmatpush1.bf16.msra.mxu0 0
    %293 = vmatprep.subr.bf16.mxu0 0
    %294 = vmatpush1.bf16.msra.mxu0 0
    %295 = vmatprep.subr.bf16.mxu0 0
    %296 = vmatpush1.bf16.msra.mxu0 0
    %297 = vmatprep.subr.bf16.mxu0 0
    %298 = vmatpush1.bf16.msra.mxu0 0
    %299 = vmatprep.subr.bf16.mxu0 0
    %300 = vmatpush1.bf16.msra.mxu0 0
    %301 = vmatprep.subr.bf16.mxu0 0
    %302 = vmatpush1.bf16.msra.mxu0 0
    %303 = vmatprep.mubr.bf16.mxu0 0
    %304 = vmatmul.mubr.bf16.gmra.mrb[0].mxu0 %v78
    %v305 = vpop.f32.mrb[0].mxu0
    %v306 = vadd.f32 0.0, %v305
    %v307 = vpop.f32.mrb[0].mxu0
    %v308 = vadd.f32 0.0, %v307
    %v309 = vpop.f32.mrb[0].mxu0
    %v310 = vpop.f32.mrb[0].mxu0
    %311 = vdwg.mxu0
    %312 = vmatprep.subr.bf16.mxu0 %v210
    %313 = vmatpush1.bf16.msra.mxu0 %v209
    %314 = vmatprep.subr.bf16.mxu0 %v214
    %315 = vmatpush1.bf16.msra.mxu0 %v213
    %316 = vmatprep.subr.bf16.mxu0 %v218
    %317 = vmatpush1.bf16.msra.mxu0 %v217
    %318 = vmatprep.subr.bf16.mxu0 %v222
    %319 = vmatpush1.bf16.msra.mxu0 %v221
    %320 = vmatprep.subr.bf16.mxu0 %v226
    %321 = vmatpush1.bf16.msra.mxu0 %v225
    %322 = vmatprep.subr.bf16.mxu0 %v230
    %323 = vmatpush1.bf16.msra.mxu0 %v229
    %324 = vmatprep.subr.bf16.mxu0 %v234
    %325 = vmatpush1.bf16.msra.mxu0 %v233
    %326 = vmatprep.subr.bf16.mxu0 %v238
    %327 = vmatpush1.bf16.msra.mxu0 %v237
    %328 = vmatprep.subr.bf16.mxu0 0
    %329 = vmatpush1.bf16.msra.mxu0 0
    %330 = vmatprep.subr.bf16.mxu0 0
    %331 = vmatpush1.bf16.msra.mxu0 0
    %332 = vmatprep.subr.bf16.mxu0 0
    %333 = vmatpush1.bf16.msra.mxu0 0
    %334 = vmatprep.subr.bf16.mxu0 0
    %335 = vmatpush1.bf16.msra.mxu0 0
    %336 = vmatprep.subr.bf16.mxu0 0
    %337 = vmatpush1.bf16.msra.mxu0 0
    %338 = vmatprep.subr.bf16.mxu0 0
    %339 = vmatpush1.bf16.msra.mxu0 0
    %340 = vmatprep.subr.bf16.mxu0 0
    %341 = vmatpush1.bf16.msra.mxu0 0
    %342 = vmatprep.subr.bf16.mxu0 0
    %343 = vmatpush1.bf16.msra.mxu0 0
    %344 = vmatprep.mubr.bf16.mxu0 0
    %345 = vmatmul.mubr.bf16.gmra.mrb[0].mxu0 %v78
    %v346 = vpop.f32.mrb[0].mxu0
    %v347 = vadd.f32 0.0, %v346
    %v348 = vpop.f32.mrb[0].mxu0
    %v349 = vadd.f32 0.0, %v348
    %v350 = vpop.f32.mrb[0].mxu0
    %v351 = vpop.f32.mrb[0].mxu0
    %352 = vdwg.mxu0
    %v353 = vrot.slane %v306, 4
    %v354 = vadd.f32 %v306, %v353
    %v355 = vrot.slane %v354, 2
    %v356 = vadd.f32 %v354, %v355
    %v357 = vrot.slane %v356, 1
    %v358 = vadd.f32 %v356, %v357
    %v359 = vrot.slane %v308, 4
    %v360 = vadd.f32 %v308, %v359
    %v361 = vrot.slane %v360, 2
    %v362 = vadd.f32 %v360, %v361
    %v363 = vrot.slane %v362, 1
    %v364 = vadd.f32 %v362, %v363
    %v365 = vrot.slane %v347, 4
    %v366 = vadd.f32 %v347, %v365
    %v367 = vrot.slane %v366, 2
    %v368 = vadd.f32 %v366, %v367
    %v369 = vrot.slane %v368, 1
    %v370 = vadd.f32 %v368, %v369
    %v371 = vrot.slane %v349, 4
    %v372 = vadd.f32 %v349, %v371
    %v373 = vrot.slane %v372, 2
    %v374 = vadd.f32 %v372, %v373
    %v375 = vrot.slane %v374, 1
    %v376 = vadd.f32 %v374, %v375
    %v377 = vmul.f32 %v358, 0.125
    %v378 = vmul.f32 %v364, 0.125
    %v379 = vmul.f32 %v370, 0.125
    %v380 = vmul.f32 %v376, 0.125
    %v381 = vmul.f32 %v306, %v306
    %v382 = vmul.f32 %v308, %v308
    %v383 = vmul.f32 %v347, %v347
    %v384 = vmul.f32 %v349, %v349
    %v385 = vrot.slane %v381, 4
    %v386 = vadd.f32 %v381, %v385
    %v387 = vrot.slane %v386, 2
    %v388 = vadd.f32 %v386, %v387
    %v389 = vrot.slane %v388, 1
    %v390 = vadd.f32 %v388, %v389
    %v391 = vrot.slane %v382, 4
    %v392 = vadd.f32 %v382, %v391
    %v393 = vrot.slane %v392, 2
    %v394 = vadd.f32 %v392, %v393
    %v395 = vrot.slane %v394, 1
    %v396 = vadd.f32 %v394, %v395
    %v397 = vrot.slane %v383, 4
    %v398 = vadd.f32 %v383, %v397
    %v399 = vrot.slane %v398, 2
    %v400 = vadd.f32 %v398, %v399
    %v401 = vrot.slane %v400, 1
    %v402 = vadd.f32 %v400, %v401
    %v403 = vrot.slane %v384, 4
    %v404 = vadd.f32 %v384, %v403
    %v405 = vrot.slane %v404, 2
    %v406 = vadd.f32 %v404, %v405
    %v407 = vrot.slane %v406, 1
    %v408 = vadd.f32 %v406, %v407
    %v409 = vmul.f32 %v390, 0.125
    %v410 = vmul.f32 %v396, 0.125
    %v411 = vmul.f32 %v402, 0.125
    %v412 = vmul.f32 %v408, 0.125
    %v413 = vmul.f32 %v377, %v377
    %v414 = vmul.f32 %v378, %v378
    %v415 = vmul.f32 %v379, %v379
    %v416 = vmul.f32 %v380, %v380
    %v417 = vsub.f32 %v409, %v413
    %v418 = vsub.f32 %v410, %v414
    %v419 = vsub.f32 %v411, %v415
    %v420 = vsub.f32 %v412, %v416
    %v421 = vld [vmem:[%s3] sm:$0xf]
    %v422 = vadd.f32 %v417, 1e-05
    %v423 = vadd.f32 %v418, 1e-05
    %v424 = vadd.f32 %v419, 1e-05
    %v425 = vadd.f32 %v420, 1e-05
    %v426 = vrsqrt.pop %v422
    %v427 = vrsqrt.pop %v423
    %v428 = vrsqrt.pop %v424
    %v429 = vrsqrt.pop %v425
    %v434 = vcombine.low %v426, %v427
    %v435 = vcombine.low %v428, %v429
    %v437 = vunpack.c.l.s4 1966171168
    %v438 = vunpack.c.0.s8 %v437
    %v439 = vlaneseq
    %v440 = vshrl.u32 %v439, 7
    %v441 = vsub.s32 %v438, %v440
    %v442 = vrot.slane %v434, %v441
    %v444 = vunpack.c.l.s4 1966171168
    %v445 = vunpack.c.0.s8 %v444
    %v446 = vlaneseq
    %v447 = vshrl.u32 %v446, 7
    %v448 = vsub.s32 %v445, %v447
    %v449 = vrot.slane %v435, %v448
    %v450 = vcombine.low %v442, %v449
    %v452 = vunpack.c.l.s4 1966171168
    %v453 = vunpack.c.0.s8 %v452
    %v454 = vlaneseq
    %v455 = vshrl.u32 %v454, 7
    %v456 = vsub.s32 %v453, %v455
    %v457 = vrot.slane %v450, %v456
    %v459 = vmul.f32 %v421, %v457
    %v460 = vld [vmem:[%s4] sm:$0xf]
    %v462 = vlaneseq
    %v463 = vshrl.u32 %v462, 7
    %v464 = vsub.s32 0, %v463
    %v465 = vrot.slane %v459, %v464
    %v466 = vlaneseq
    %v467 = vshrl.u32 %v466, 7
    %v468 = vsub.s32 1, %v467
    %v469 = vrot.slane %v459, %v468
    %v470 = vlaneseq
    %v471 = vshrl.u32 %v470, 7
    %v472 = vsub.s32 2, %v471
    %v473 = vrot.slane %v459, %v472
    %v474 = vlaneseq
    %v475 = vshrl.u32 %v474, 7
    %v476 = vsub.s32 3, %v475
    %v477 = vrot.slane %v459, %v476
    %v482 = vmul.f32 %v377, %v465
    %v483 = vmul.f32 %v378, %v469
    %v484 = vmul.f32 %v379, %v473
    %v485 = vmul.f32 %v380, %v477
    %v490 = vcombine.low %v482, %v483
    %v491 = vcombine.low %v484, %v485
    %v493 = vunpack.c.l.s4 1966171168
    %v494 = vunpack.c.0.s8 %v493
    %v495 = vlaneseq
    %v496 = vshrl.u32 %v495, 7
    %v497 = vsub.s32 %v494, %v496
    %v498 = vrot.slane %v490, %v497
    %v500 = vunpack.c.l.s4 1966171168
    %v501 = vunpack.c.0.s8 %v500
    %v502 = vlaneseq
    %v503 = vshrl.u32 %v502, 7
    %v504 = vsub.s32 %v501, %v503
    %v505 = vrot.slane %v491, %v504
    %v506 = vcombine.low %v498, %v505
    %v508 = vunpack.c.l.s4 1966171168
    %v509 = vunpack.c.0.s8 %v508
    %v510 = vlaneseq
    %v511 = vshrl.u32 %v510, 7
    %v512 = vsub.s32 %v509, %v511
    %v513 = vrot.slane %v506, %v512
    %v515 = vsub.f32 %v460, %v513
    %v516 = vmul.f32 %v306, %v465
    %v517 = vmul.f32 %v308, %v469
    %v518 = vmul.f32 %v347, %v473
    %v519 = vmul.f32 %v349, %v477
    %v521 = vlaneseq
    %v522 = vshrl.u32 %v521, 7
    %v523 = vsub.s32 0, %v522
    %v524 = vrot.slane %v515, %v523
    %v525 = vlaneseq
    %v526 = vshrl.u32 %v525, 7
    %v527 = vsub.s32 1, %v526
    %v528 = vrot.slane %v515, %v527
    %v529 = vlaneseq
    %v530 = vshrl.u32 %v529, 7
    %v531 = vsub.s32 2, %v530
    %v532 = vrot.slane %v515, %v531
    %v533 = vlaneseq
    %v534 = vshrl.u32 %v533, 7
    %v535 = vsub.s32 3, %v534
    %v536 = vrot.slane %v515, %v535
    %v541 = vadd.f32 %v516, %v524
    %v542 = vadd.f32 %v517, %v528
    %v543 = vadd.f32 %v518, %v532
    %v544 = vadd.f32 %v519, %v536
    %v545 = vmul.f32 %v541, 0.5
    %v546 = vmul.f32 %v542, 0.5
    %v547 = vmul.f32 %v543, 0.5
    %v548 = vmul.f32 %v544, 0.5
    %v549 = vtanh.pop %v545
    %v550 = vtanh.pop %v546
    %v551 = vtanh.pop %v547
    %v552 = vtanh.pop %v548
    %v553 = vmul.f32 %v549, 0.5
    %v554 = vmul.f32 %v550, 0.5
    %v555 = vmul.f32 %v551, 0.5
    %v556 = vmul.f32 %v552, 0.5
    %v557 = vadd.f32 %v553, 0.5
    %v558 = vadd.f32 %v554, 0.5
    %v559 = vadd.f32 %v555, 0.5
    %v560 = vadd.f32 %v556, 0.5
    %v561 = vld [vmem:[%s1] sm:$0xff]
    %563 = vset.pattern.permute.xlu0 0
    %564 = vperm.xlu0 %563, %v561
    %v565 = vpop.permute.xlu0 %564
    %v567 = vmul.f32 %v557, %v565
    %v568 = vmul.f32 %v558, %v565
    %v569 = vmul.f32 %v559, %v565
    %v570 = vmul.f32 %v560, %v565
    %v571 = vpack.c.bf16 %v567, %v567
    %v572 = vpack.c.bf16 %v568, %v568
    %v573 = vpack.c.bf16 %v569, %v569
    %v574 = vpack.c.bf16 %v570, %v570
    %v575 = vld [vmem:[#allocation5] sm:$0xff]
    %v576 = vld [vmem:[#allocation5 + $0x8] sm:$0xff]
    %v577 = vld [vmem:[#allocation5 + $0x10] sm:$0xff]
    %v578 = vld [vmem:[#allocation5 + $0x18] sm:$0xff]
    %v579 = vld [vmem:[#allocation5 + $0x20] sm:$0xff]
    %v580 = vld [vmem:[#allocation5 + $0x28] sm:$0xff]
    %v581 = vld [vmem:[#allocation5 + $0x30] sm:$0xff]
    %v582 = vld [vmem:[#allocation5 + $0x38] sm:$0xff]
    %v583 = vld [vmem:[#allocation5 + $0x40] sm:$0xff]
    %v584 = vld [vmem:[#allocation5 + $0x48] sm:$0xff]
    %v585 = vld [vmem:[#allocation5 + $0x50] sm:$0xff]
    %v586 = vld [vmem:[#allocation5 + $0x58] sm:$0xff]
    %v587 = vld [vmem:[#allocation5 + $0x60] sm:$0xff]
    %v588 = vld [vmem:[#allocation5 + $0x68] sm:$0xff]
    %v589 = vld [vmem:[#allocation5 + $0x70] sm:$0xff]
    %v590 = vld [vmem:[#allocation5 + $0x78] sm:$0xff]
    %v591 = vld [vmem:[#allocation5 + $0x80] sm:$0xff]
    %v592 = vld [vmem:[#allocation5 + $0x88] sm:$0xff]
    %v593 = vld [vmem:[#allocation5 + $0x90] sm:$0xff]
    %v594 = vld [vmem:[#allocation5 + $0x98] sm:$0xff]
    %v595 = vld [vmem:[#allocation5 + $0xa0] sm:$0xff]
    %v596 = vld [vmem:[#allocation5 + $0xa8] sm:$0xff]
    %v597 = vld [vmem:[#allocation5 + $0xb0] sm:$0xff]
    %v598 = vld [vmem:[#allocation5 + $0xb8] sm:$0xff]
    %v599 = vld [vmem:[#allocation5 + $0xc0] sm:$0xff]
    %v600 = vld [vmem:[#allocation5 + $0xc8] sm:$0xff]
    %v601 = vld [vmem:[#allocation5 + $0xd0] sm:$0xff]
    %v602 = vld [vmem:[#allocation5 + $0xd8] sm:$0xff]
    %v603 = vld [vmem:[#allocation5 + $0xe0] sm:$0xff]
    %v604 = vld [vmem:[#allocation5 + $0xe8] sm:$0xff]
    %v605 = vld [vmem:[#allocation5 + $0xf0] sm:$0xff]
    %v606 = vld [vmem:[#allocation5 + $0xf8] sm:$0xff]
    %v607 = vld [vmem:[#allocation5 + $0x100] sm:$0xff]
    %v608 = vld [vmem:[#allocation5 + $0x108] sm:$0xff]
    %v609 = vld [vmem:[#allocation5 + $0x110] sm:$0xff]
    %v610 = vld [vmem:[#allocation5 + $0x118] sm:$0xff]
    %v611 = vld [vmem:[#allocation5 + $0x120] sm:$0xff]
    %v612 = vld [vmem:[#allocation5 + $0x128] sm:$0xff]
    %v613 = vld [vmem:[#allocation5 + $0x130] sm:$0xff]
    %v614 = vld [vmem:[#allocation5 + $0x138] sm:$0xff]
    %v615 = vld [vmem:[#allocation5 + $0x140] sm:$0xff]
    %v616 = vld [vmem:[#allocation5 + $0x148] sm:$0xff]
    %v617 = vld [vmem:[#allocation5 + $0x150] sm:$0xff]
    %v618 = vld [vmem:[#allocation5 + $0x158] sm:$0xff]
    %v619 = vld [vmem:[#allocation5 + $0x160] sm:$0xff]
    %v620 = vld [vmem:[#allocation5 + $0x168] sm:$0xff]
    %v621 = vld [vmem:[#allocation5 + $0x170] sm:$0xff]
    %v622 = vld [vmem:[#allocation5 + $0x178] sm:$0xff]
    %v623 = vld [vmem:[#allocation5 + $0x180] sm:$0xff]
    %v624 = vld [vmem:[#allocation5 + $0x188] sm:$0xff]
    %v625 = vld [vmem:[#allocation5 + $0x190] sm:$0xff]
    %v626 = vld [vmem:[#allocation5 + $0x198] sm:$0xff]
    %v627 = vld [vmem:[#allocation5 + $0x1a0] sm:$0xff]
    %v628 = vld [vmem:[#allocation5 + $0x1a8] sm:$0xff]
    %v629 = vld [vmem:[#allocation5 + $0x1b0] sm:$0xff]
    %v630 = vld [vmem:[#allocation5 + $0x1b8] sm:$0xff]
    %v631 = vld [vmem:[#allocation5 + $0x1c0] sm:$0xff]
    %v632 = vld [vmem:[#allocation5 + $0x1c8] sm:$0xff]
    %v633 = vld [vmem:[#allocation5 + $0x1d0] sm:$0xff]
    %v634 = vld [vmem:[#allocation5 + $0x1d8] sm:$0xff]
    %v635 = vld [vmem:[#allocation5 + $0x1e0] sm:$0xff]
    %v636 = vld [vmem:[#allocation5 + $0x1e8] sm:$0xff]
    %v637 = vld [vmem:[#allocation5 + $0x1f0] sm:$0xff]
    %v638 = vld [vmem:[#allocation5 + $0x1f8] sm:$0xff]
    %v639 = vld [vmem:[#allocation5 + $0x200] sm:$0xff]
    %v640 = vld [vmem:[#allocation5 + $0x208] sm:$0xff]
    %v641 = vld [vmem:[#allocation5 + $0x210] sm:$0xff]
    %v642 = vld [vmem:[#allocation5 + $0x218] sm:$0xff]
    %v643 = vld [vmem:[#allocation5 + $0x220] sm:$0xff]
    %v644 = vld [vmem:[#allocation5 + $0x228] sm:$0xff]
    %v645 = vld [vmem:[#allocation5 + $0x230] sm:$0xff]
    %v646 = vld [vmem:[#allocation5 + $0x238] sm:$0xff]
    %v647 = vld [vmem:[#allocation5 + $0x240] sm:$0xff]
    %v648 = vld [vmem:[#allocation5 + $0x248] sm:$0xff]
    %v649 = vld [vmem:[#allocation5 + $0x250] sm:$0xff]
    %v650 = vld [vmem:[#allocation5 + $0x258] sm:$0xff]
    %v651 = vld [vmem:[#allocation5 + $0x260] sm:$0xff]
    %v652 = vld [vmem:[#allocation5 + $0x268] sm:$0xff]
    %v653 = vld [vmem:[#allocation5 + $0x270] sm:$0xff]
    %v654 = vld [vmem:[#allocation5 + $0x278] sm:$0xff]
    %v655 = vld [vmem:[#allocation5 + $0x280] sm:$0xff]
    %v656 = vld [vmem:[#allocation5 + $0x288] sm:$0xff]
    %v657 = vld [vmem:[#allocation5 + $0x290] sm:$0xff]
    %v658 = vld [vmem:[#allocation5 + $0x298] sm:$0xff]
    %v659 = vld [vmem:[#allocation5 + $0x2a0] sm:$0xff]
    %v660 = vld [vmem:[#allocation5 + $0x2a8] sm:$0xff]
    %v661 = vld [vmem:[#allocation5 + $0x2b0] sm:$0xff]
    %v662 = vld [vmem:[#allocation5 + $0x2b8] sm:$0xff]
    %v663 = vld [vmem:[#allocation5 + $0x2c0] sm:$0xff]
    %v664 = vld [vmem:[#allocation5 + $0x2c8] sm:$0xff]
    %v665 = vld [vmem:[#allocation5 + $0x2d0] sm:$0xff]
    %v666 = vld [vmem:[#allocation5 + $0x2d8] sm:$0xff]
    %v667 = vld [vmem:[#allocation5 + $0x2e0] sm:$0xff]
    %v668 = vld [vmem:[#allocation5 + $0x2e8] sm:$0xff]
    %v669 = vld [vmem:[#allocation5 + $0x2f0] sm:$0xff]
    %v670 = vld [vmem:[#allocation5 + $0x2f8] sm:$0xff]
    %v671 = vld [vmem:[#allocation5 + $0x300] sm:$0xff]
    %v672 = vld [vmem:[#allocation5 + $0x308] sm:$0xff]
    %v673 = vld [vmem:[#allocation5 + $0x310] sm:$0xff]
    %v674 = vld [vmem:[#allocation5 + $0x318] sm:$0xff]
    %v675 = vld [vmem:[#allocation5 + $0x320] sm:$0xff]
    %v676 = vld [vmem:[#allocation5 + $0x328] sm:$0xff]
    %v677 = vld [vmem:[#allocation5 + $0x330] sm:$0xff]
    %v678 = vld [vmem:[#allocation5 + $0x338] sm:$0xff]
    %v679 = vld [vmem:[#allocation5 + $0x340] sm:$0xff]
    %v680 = vld [vmem:[#allocation5 + $0x348] sm:$0xff]
    %v681 = vld [vmem:[#allocation5 + $0x350] sm:$0xff]
    %v682 = vld [vmem:[#allocation5 + $0x358] sm:$0xff]
    %v683 = vld [vmem:[#allocation5 + $0x360] sm:$0xff]
    %v684 = vld [vmem:[#allocation5 + $0x368] sm:$0xff]
    %v685 = vld [vmem:[#allocation5 + $0x370] sm:$0xff]
    %v686 = vld [vmem:[#allocation5 + $0x378] sm:$0xff]
    %v687 = vld [vmem:[#allocation5 + $0x380] sm:$0xff]
    %v688 = vld [vmem:[#allocation5 + $0x388] sm:$0xff]
    %v689 = vld [vmem:[#allocation5 + $0x390] sm:$0xff]
    %v690 = vld [vmem:[#allocation5 + $0x398] sm:$0xff]
    %v691 = vld [vmem:[#allocation5 + $0x3a0] sm:$0xff]
    %v692 = vld [vmem:[#allocation5 + $0x3a8] sm:$0xff]
    %v693 = vld [vmem:[#allocation5 + $0x3b0] sm:$0xff]
    %v694 = vld [vmem:[#allocation5 + $0x3b8] sm:$0xff]
    %v695 = vld [vmem:[#allocation5 + $0x3c0] sm:$0xff]
    %v696 = vld [vmem:[#allocation5 + $0x3c8] sm:$0xff]
    %v697 = vld [vmem:[#allocation5 + $0x3d0] sm:$0xff]
    %v698 = vld [vmem:[#allocation5 + $0x3d8] sm:$0xff]
    %v699 = vld [vmem:[#allocation5 + $0x3e0] sm:$0xff]
    %v700 = vld [vmem:[#allocation5 + $0x3e8] sm:$0xff]
    %v701 = vld [vmem:[#allocation5 + $0x3f0] sm:$0xff]
    %v702 = vld [vmem:[#allocation5 + $0x3f8] sm:$0xff]
    %v831 = vunpack.c.l.b16 %v575
    %v832 = vunpack.c.h.b16 %v575
    %v833 = vunpack.c.l.b16 %v576
    %v834 = vunpack.c.h.b16 %v576
    %v835 = vunpack.c.l.b16 %v577
    %v836 = vunpack.c.h.b16 %v577
    %v837 = vunpack.c.l.b16 %v578
    %v838 = vunpack.c.h.b16 %v578
    %v839 = vunpack.c.l.b16 %v579
    %v840 = vunpack.c.h.b16 %v579
    %v841 = vunpack.c.l.b16 %v580
    %v842 = vunpack.c.h.b16 %v580
    %v843 = vunpack.c.l.b16 %v581
    %v844 = vunpack.c.h.b16 %v581
    %v845 = vunpack.c.l.b16 %v582
    %v846 = vunpack.c.h.b16 %v582
    %v847 = vunpack.c.l.b16 %v583
    %v848 = vunpack.c.h.b16 %v583
    %v849 = vunpack.c.l.b16 %v584
    %v850 = vunpack.c.h.b16 %v584
    %v851 = vunpack.c.l.b16 %v585
    %v852 = vunpack.c.h.b16 %v585
    %v853 = vunpack.c.l.b16 %v586
    %v854 = vunpack.c.h.b16 %v586
    %v855 = vunpack.c.l.b16 %v587
    %v856 = vunpack.c.h.b16 %v587
    %v857 = vunpack.c.l.b16 %v588
    %v858 = vunpack.c.h.b16 %v588
    %v859 = vunpack.c.l.b16 %v589
    %v860 = vunpack.c.h.b16 %v589
    %v861 = vunpack.c.l.b16 %v590
    %v862 = vunpack.c.h.b16 %v590
    %v863 = vunpack.c.l.b16 %v591
    %v864 = vunpack.c.h.b16 %v591
    %v865 = vunpack.c.l.b16 %v592
    %v866 = vunpack.c.h.b16 %v592
    %v867 = vunpack.c.l.b16 %v593
    %v868 = vunpack.c.h.b16 %v593
    %v869 = vunpack.c.l.b16 %v594
    %v870 = vunpack.c.h.b16 %v594
    %v871 = vunpack.c.l.b16 %v595
    %v872 = vunpack.c.h.b16 %v595
    %v873 = vunpack.c.l.b16 %v596
    %v874 = vunpack.c.h.b16 %v596
    %v875 = vunpack.c.l.b16 %v597
    %v876 = vunpack.c.h.b16 %v597
    %v877 = vunpack.c.l.b16 %v598
    %v878 = vunpack.c.h.b16 %v598
    %v879 = vunpack.c.l.b16 %v599
    %v880 = vunpack.c.h.b16 %v599
    %v881 = vunpack.c.l.b16 %v600
    %v882 = vunpack.c.h.b16 %v600
    %v883 = vunpack.c.l.b16 %v601
    %v884 = vunpack.c.h.b16 %v601
    %v885 = vunpack.c.l.b16 %v602
    %v886 = vunpack.c.h.b16 %v602
    %v887 = vunpack.c.l.b16 %v603
    %v888 = vunpack.c.h.b16 %v603
    %v889 = vunpack.c.l.b16 %v604
    %v890 = vunpack.c.h.b16 %v604
    %v891 = vunpack.c.l.b16 %v605
    %v892 = vunpack.c.h.b16 %v605
    %v893 = vunpack.c.l.b16 %v606
    %v894 = vunpack.c.h.b16 %v606
    %v895 = vunpack.c.l.b16 %v607
    %v896 = vunpack.c.h.b16 %v607
    %v897 = vunpack.c.l.b16 %v608
    %v898 = vunpack.c.h.b16 %v608
    %v899 = vunpack.c.l.b16 %v609
    %v900 = vunpack.c.h.b16 %v609
    %v901 = vunpack.c.l.b16 %v610
    %v902 = vunpack.c.h.b16 %v610
    %v903 = vunpack.c.l.b16 %v611
    %v904 = vunpack.c.h.b16 %v611
    %v905 = vunpack.c.l.b16 %v612
    %v906 = vunpack.c.h.b16 %v612
    %v907 = vunpack.c.l.b16 %v613
    %v908 = vunpack.c.h.b16 %v613
    %v909 = vunpack.c.l.b16 %v614
    %v910 = vunpack.c.h.b16 %v614
    %v911 = vunpack.c.l.b16 %v615
    %v912 = vunpack.c.h.b16 %v615
    %v913 = vunpack.c.l.b16 %v616
    %v914 = vunpack.c.h.b16 %v616
    %v915 = vunpack.c.l.b16 %v617
    %v916 = vunpack.c.h.b16 %v617
    %v917 = vunpack.c.l.b16 %v618
    %v918 = vunpack.c.h.b16 %v618
    %v919 = vunpack.c.l.b16 %v619
    %v920 = vunpack.c.h.b16 %v619
    %v921 = vunpack.c.l.b16 %v620
    %v922 = vunpack.c.h.b16 %v620
    %v923 = vunpack.c.l.b16 %v621
    %v924 = vunpack.c.h.b16 %v621
    %v925 = vunpack.c.l.b16 %v622
    %v926 = vunpack.c.h.b16 %v622
    %v927 = vunpack.c.l.b16 %v623
    %v928 = vunpack.c.h.b16 %v623
    %v929 = vunpack.c.l.b16 %v624
    %v930 = vunpack.c.h.b16 %v624
    %v931 = vunpack.c.l.b16 %v625
    %v932 = vunpack.c.h.b16 %v625
    %v933 = vunpack.c.l.b16 %v626
    %v934 = vunpack.c.h.b16 %v626
    %v935 = vunpack.c.l.b16 %v627
    %v936 = vunpack.c.h.b16 %v627
    %v937 = vunpack.c.l.b16 %v628
    %v938 = vunpack.c.h.b16 %v628
    %v939 = vunpack.c.l.b16 %v629
    %v940 = vunpack.c.h.b16 %v629
    %v941 = vunpack.c.l.b16 %v630
    %v942 = vunpack.c.h.b16 %v630
    %v943 = vunpack.c.l.b16 %v631
    %v944 = vunpack.c.h.b16 %v631
    %v945 = vunpack.c.l.b16 %v632
    %v946 = vunpack.c.h.b16 %v632
    %v947 = vunpack.c.l.b16 %v633
    %v948 = vunpack.c.h.b16 %v633
    %v949 = vunpack.c.l.b16 %v634
    %v950 = vunpack.c.h.b16 %v634
    %v951 = vunpack.c.l.b16 %v635
    %v952 = vunpack.c.h.b16 %v635
    %v953 = vunpack.c.l.b16 %v636
    %v954 = vunpack.c.h.b16 %v636
    %v955 = vunpack.c.l.b16 %v637
    %v956 = vunpack.c.h.b16 %v637
    %v957 = vunpack.c.l.b16 %v638
    %v958 = vunpack.c.h.b16 %v638
    %v959 = vunpack.c.l.b16 %v639
    %v960 = vunpack.c.h.b16 %v639
    %v961 = vunpack.c.l.b16 %v640
    %v962 = vunpack.c.h.b16 %v640
    %v963 = vunpack.c.l.b16 %v641
    %v964 = vunpack.c.h.b16 %v641
    %v965 = vunpack.c.l.b16 %v642
    %v966 = vunpack.c.h.b16 %v642
    %v967 = vunpack.c.l.b16 %v643
    %v968 = vunpack.c.h.b16 %v643
    %v969 = vunpack.c.l.b16 %v644
    %v970 = vunpack.c.h.b16 %v644
    %v971 = vunpack.c.l.b16 %v645
    %v972 = vunpack.c.h.b16 %v645
    %v973 = vunpack.c.l.b16 %v646
    %v974 = vunpack.c.h.b16 %v646
    %v975 = vunpack.c.l.b16 %v647
    %v976 = vunpack.c.h.b16 %v647
    %v977 = vunpack.c.l.b16 %v648
    %v978 = vunpack.c.h.b16 %v648
    %v979 = vunpack.c.l.b16 %v649
    %v980 = vunpack.c.h.b16 %v649
    %v981 = vunpack.c.l.b16 %v650
    %v982 = vunpack.c.h.b16 %v650
    %v983 = vunpack.c.l.b16 %v651
    %v984 = vunpack.c.h.b16 %v651
    %v985 = vunpack.c.l.b16 %v652
    %v986 = vunpack.c.h.b16 %v652
    %v987 = vunpack.c.l.b16 %v653
    %v988 = vunpack.c.h.b16 %v653
    %v989 = vunpack.c.l.b16 %v654
    %v990 = vunpack.c.h.b16 %v654
    %v991 = vunpack.c.l.b16 %v655
    %v992 = vunpack.c.h.b16 %v655
    %v993 = vunpack.c.l.b16 %v656
    %v994 = vunpack.c.h.b16 %v656
    %v995 = vunpack.c.l.b16 %v657
    %v996 = vunpack.c.h.b16 %v657
    %v997 = vunpack.c.l.b16 %v658
    %v998 = vunpack.c.h.b16 %v658
    %v999 = vunpack.c.l.b16 %v659
    %v1000 = vunpack.c.h.b16 %v659
    %v1001 = vunpack.c.l.b16 %v660
    %v1002 = vunpack.c.h.b16 %v660
    %v1003 = vunpack.c.l.b16 %v661
    %v1004 = vunpack.c.h.b16 %v661
    %v1005 = vunpack.c.l.b16 %v662
    %v1006 = vunpack.c.h.b16 %v662
    %v1007 = vunpack.c.l.b16 %v663
    %v1008 = vunpack.c.h.b16 %v663
    %v1009 = vunpack.c.l.b16 %v664
    %v1010 = vunpack.c.h.b16 %v664
    %v1011 = vunpack.c.l.b16 %v665
    %v1012 = vunpack.c.h.b16 %v665
    %v1013 = vunpack.c.l.b16 %v666
    %v1014 = vunpack.c.h.b16 %v666
    %v1015 = vunpack.c.l.b16 %v667
    %v1016 = vunpack.c.h.b16 %v667
    %v1017 = vunpack.c.l.b16 %v668
    %v1018 = vunpack.c.h.b16 %v668
    %v1019 = vunpack.c.l.b16 %v669
    %v1020 = vunpack.c.h.b16 %v669
    %v1021 = vunpack.c.l.b16 %v670
    %v1022 = vunpack.c.h.b16 %v670
    %v1023 = vunpack.c.l.b16 %v671
    %v1024 = vunpack.c.h.b16 %v671
    %v1025 = vunpack.c.l.b16 %v672
    %v1026 = vunpack.c.h.b16 %v672
    %v1027 = vunpack.c.l.b16 %v673
    %v1028 = vunpack.c.h.b16 %v673
    %v1029 = vunpack.c.l.b16 %v674
    %v1030 = vunpack.c.h.b16 %v674
    %v1031 = vunpack.c.l.b16 %v675
    %v1032 = vunpack.c.h.b16 %v675
    %v1033 = vunpack.c.l.b16 %v676
    %v1034 = vunpack.c.h.b16 %v676
    %v1035 = vunpack.c.l.b16 %v677
    %v1036 = vunpack.c.h.b16 %v677
    %v1037 = vunpack.c.l.b16 %v678
    %v1038 = vunpack.c.h.b16 %v678
    %v1039 = vunpack.c.l.b16 %v679
    %v1040 = vunpack.c.h.b16 %v679
    %v1041 = vunpack.c.l.b16 %v680
    %v1042 = vunpack.c.h.b16 %v680
    %v1043 = vunpack.c.l.b16 %v681
    %v1044 = vunpack.c.h.b16 %v681
    %v1045 = vunpack.c.l.b16 %v682
    %v1046 = vunpack.c.h.b16 %v682
    %v1047 = vunpack.c.l.b16 %v683
    %v1048 = vunpack.c.h.b16 %v683
    %v1049 = vunpack.c.l.b16 %v684
    %v1050 = vunpack.c.h.b16 %v684
    %v1051 = vunpack.c.l.b16 %v685
    %v1052 = vunpack.c.h.b16 %v685
    %v1053 = vunpack.c.l.b16 %v686
    %v1054 = vunpack.c.h.b16 %v686
    %v1055 = vunpack.c.l.b16 %v687
    %v1056 = vunpack.c.h.b16 %v687
    %v1057 = vunpack.c.l.b16 %v688
    %v1058 = vunpack.c.h.b16 %v688
    %v1059 = vunpack.c.l.b16 %v689
    %v1060 = vunpack.c.h.b16 %v689
    %v1061 = vunpack.c.l.b16 %v690
    %v1062 = vunpack.c.h.b16 %v690
    %v1063 = vunpack.c.l.b16 %v691
    %v1064 = vunpack.c.h.b16 %v691
    %v1065 = vunpack.c.l.b16 %v692
    %v1066 = vunpack.c.h.b16 %v692
    %v1067 = vunpack.c.l.b16 %v693
    %v1068 = vunpack.c.h.b16 %v693
    %v1069 = vunpack.c.l.b16 %v694
    %v1070 = vunpack.c.h.b16 %v694
    %v1071 = vunpack.c.l.b16 %v695
    %v1072 = vunpack.c.h.b16 %v695
    %v1073 = vunpack.c.l.b16 %v696
    %v1074 = vunpack.c.h.b16 %v696
    %v1075 = vunpack.c.l.b16 %v697
    %v1076 = vunpack.c.h.b16 %v697
    %v1077 = vunpack.c.l.b16 %v698
    %v1078 = vunpack.c.h.b16 %v698
    %v1079 = vunpack.c.l.b16 %v699
    %v1080 = vunpack.c.h.b16 %v699
    %v1081 = vunpack.c.l.b16 %v700
    %v1082 = vunpack.c.h.b16 %v700
    %v1083 = vunpack.c.l.b16 %v701
    %v1084 = vunpack.c.h.b16 %v701
    %v1085 = vunpack.c.l.b16 %v702
    %v1086 = vunpack.c.h.b16 %v702
    %v1087 = vpack.c.b16 %v835, %v831
    %v1088 = vpack.c.b16 %v836, %v832
    %v1089 = vpack.c.b16 %v837, %v833
    %v1090 = vpack.c.b16 %v838, %v834
    %v1091 = vpack.c.b16 %v843, %v839
    %v1092 = vpack.c.b16 %v844, %v840
    %v1093 = vpack.c.b16 %v845, %v841
    %v1094 = vpack.c.b16 %v846, %v842
    %v1095 = vpack.c.b16 %v851, %v847
    %v1096 = vpack.c.b16 %v852, %v848
    %v1097 = vpack.c.b16 %v853, %v849
    %v1098 = vpack.c.b16 %v854, %v850
    %v1099 = vpack.c.b16 %v859, %v855
    %v1100 = vpack.c.b16 %v860, %v856
    %v1101 = vpack.c.b16 %v861, %v857
    %v1102 = vpack.c.b16 %v862, %v858
    %v1103 = vpack.c.b16 %v867, %v863
    %v1104 = vpack.c.b16 %v868, %v864
    %v1105 = vpack.c.b16 %v869, %v865
    %v1106 = vpack.c.b16 %v870, %v866
    %v1107 = vpack.c.b16 %v875, %v871
    %v1108 = vpack.c.b16 %v876, %v872
    %v1109 = vpack.c.b16 %v877, %v873
    %v1110 = vpack.c.b16 %v878, %v874
    %v1111 = vpack.c.b16 %v883, %v879
    %v1112 = vpack.c.b16 %v884, %v880
    %v1113 = vpack.c.b16 %v885, %v881
    %v1114 = vpack.c.b16 %v886, %v882
    %v1115 = vpack.c.b16 %v891, %v887
    %v1116 = vpack.c.b16 %v892, %v888
    %v1117 = vpack.c.b16 %v893, %v889
    %v1118 = vpack.c.b16 %v894, %v890
    %v1119 = vpack.c.b16 %v899, %v895
    %v1120 = vpack.c.b16 %v900, %v896
    %v1121 = vpack.c.b16 %v901, %v897
    %v1122 = vpack.c.b16 %v902, %v898
    %v1123 = vpack.c.b16 %v907, %v903
    %v1124 = vpack.c.b16 %v908, %v904
    %v1125 = vpack.c.b16 %v909, %v905
    %v1126 = vpack.c.b16 %v910, %v906
    %v1127 = vpack.c.b16 %v915, %v911
    %v1128 = vpack.c.b16 %v916, %v912
    %v1129 = vpack.c.b16 %v917, %v913
    %v1130 = vpack.c.b16 %v918, %v914
    %v1131 = vpack.c.b16 %v923, %v919
    %v1132 = vpack.c.b16 %v924, %v920
    %v1133 = vpack.c.b16 %v925, %v921
    %v1134 = vpack.c.b16 %v926, %v922
    %v1135 = vpack.c.b16 %v931, %v927
    %v1136 = vpack.c.b16 %v932, %v928
    %v1137 = vpack.c.b16 %v933, %v929
    %v1138 = vpack.c.b16 %v934, %v930
    %v1139 = vpack.c.b16 %v939, %v935
    %v1140 = vpack.c.b16 %v940, %v936
    %v1141 = vpack.c.b16 %v941, %v937
    %v1142 = vpack.c.b16 %v942, %v938
    %v1143 = vpack.c.b16 %v947, %v943
    %v1144 = vpack.c.b16 %v948, %v944
    %v1145 = vpack.c.b16 %v949, %v945
    %v1146 = vpack.c.b16 %v950, %v946
    %v1147 = vpack.c.b16 %v955, %v951
    %v1148 = vpack.c.b16 %v956, %v952
    %v1149 = vpack.c.b16 %v957, %v953
    %v1150 = vpack.c.b16 %v958, %v954
    %v1151 = vpack.c.b16 %v963, %v959
    %v1152 = vpack.c.b16 %v964, %v960
    %v1153 = vpack.c.b16 %v965, %v961
    %v1154 = vpack.c.b16 %v966, %v962
    %v1155 = vpack.c.b16 %v971, %v967
    %v1156 = vpack.c.b16 %v972, %v968
    %v1157 = vpack.c.b16 %v973, %v969
    %v1158 = vpack.c.b16 %v974, %v970
    %v1159 = vpack.c.b16 %v979, %v975
    %v1160 = vpack.c.b16 %v980, %v976
    %v1161 = vpack.c.b16 %v981, %v977
    %v1162 = vpack.c.b16 %v982, %v978
    %v1163 = vpack.c.b16 %v987, %v983
    %v1164 = vpack.c.b16 %v988, %v984
    %v1165 = vpack.c.b16 %v989, %v985
    %v1166 = vpack.c.b16 %v990, %v986
    %v1167 = vpack.c.b16 %v995, %v991
    %v1168 = vpack.c.b16 %v996, %v992
    %v1169 = vpack.c.b16 %v997, %v993
    %v1170 = vpack.c.b16 %v998, %v994
    %v1171 = vpack.c.b16 %v1003, %v999
    %v1172 = vpack.c.b16 %v1004, %v1000
    %v1173 = vpack.c.b16 %v1005, %v1001
    %v1174 = vpack.c.b16 %v1006, %v1002
    %v1175 = vpack.c.b16 %v1011, %v1007
    %v1176 = vpack.c.b16 %v1012, %v1008
    %v1177 = vpack.c.b16 %v1013, %v1009
    %v1178 = vpack.c.b16 %v1014, %v1010
    %v1179 = vpack.c.b16 %v1019, %v1015
    %v1180 = vpack.c.b16 %v1020, %v1016
    %v1181 = vpack.c.b16 %v1021, %v1017
    %v1182 = vpack.c.b16 %v1022, %v1018
    %v1183 = vpack.c.b16 %v1027, %v1023
    %v1184 = vpack.c.b16 %v1028, %v1024
    %v1185 = vpack.c.b16 %v1029, %v1025
    %v1186 = vpack.c.b16 %v1030, %v1026
    %v1187 = vpack.c.b16 %v1035, %v1031
    %v1188 = vpack.c.b16 %v1036, %v1032
    %v1189 = vpack.c.b16 %v1037, %v1033
    %v1190 = vpack.c.b16 %v1038, %v1034
    %v1191 = vpack.c.b16 %v1043, %v1039
    %v1192 = vpack.c.b16 %v1044, %v1040
    %v1193 = vpack.c.b16 %v1045, %v1041
    %v1194 = vpack.c.b16 %v1046, %v1042
    %v1195 = vpack.c.b16 %v1051, %v1047
    %v1196 = vpack.c.b16 %v1052, %v1048
    %v1197 = vpack.c.b16 %v1053, %v1049
    %v1198 = vpack.c.b16 %v1054, %v1050
    %v1199 = vpack.c.b16 %v1059, %v1055
    %v1200 = vpack.c.b16 %v1060, %v1056
    %v1201 = vpack.c.b16 %v1061, %v1057
    %v1202 = vpack.c.b16 %v1062, %v1058
    %v1203 = vpack.c.b16 %v1067, %v1063
    %v1204 = vpack.c.b16 %v1068, %v1064
    %v1205 = vpack.c.b16 %v1069, %v1065
    %v1206 = vpack.c.b16 %v1070, %v1066
    %v1207 = vpack.c.b16 %v1075, %v1071
    %v1208 = vpack.c.b16 %v1076, %v1072
    %v1209 = vpack.c.b16 %v1077, %v1073
    %v1210 = vpack.c.b16 %v1078, %v1074
    %v1211 = vpack.c.b16 %v1083, %v1079
    %v1212 = vpack.c.b16 %v1084, %v1080
    %v1213 = vpack.c.b16 %v1085, %v1081
    %v1214 = vpack.c.b16 %v1086, %v1082
    %1343 = vmatprep.subr.bf16.mxu0 %v1088
    %1344 = vmatpush1.bf16.msra.mxu0 %v1087
    %1345 = vmatprep.subr.bf16.mxu0 %v1092
    %1346 = vmatpush1.bf16.msra.mxu0 %v1091
    %1347 = vmatprep.subr.bf16.mxu0 %v1096
    %1348 = vmatpush1.bf16.msra.mxu0 %v1095
    %1349 = vmatprep.subr.bf16.mxu0 %v1100
    %1350 = vmatpush1.bf16.msra.mxu0 %v1099
    %1351 = vmatprep.subr.bf16.mxu0 %v1104
    %1352 = vmatpush1.bf16.msra.mxu0 %v1103
    %1353 = vmatprep.subr.bf16.mxu0 %v1108
    %1354 = vmatpush1.bf16.msra.mxu0 %v1107
    %1355 = vmatprep.subr.bf16.mxu0 %v1112
    %1356 = vmatpush1.bf16.msra.mxu0 %v1111
    %1357 = vmatprep.subr.bf16.mxu0 %v1116
    %1358 = vmatpush1.bf16.msra.mxu0 %v1115
    %1359 = vmatprep.subr.bf16.mxu0 %v1120
    %1360 = vmatpush1.bf16.msra.mxu0 %v1119
    %1361 = vmatprep.subr.bf16.mxu0 %v1124
    %1362 = vmatpush1.bf16.msra.mxu0 %v1123
    %1363 = vmatprep.subr.bf16.mxu0 %v1128
    %1364 = vmatpush1.bf16.msra.mxu0 %v1127
    %1365 = vmatprep.subr.bf16.mxu0 %v1132
    %1366 = vmatpush1.bf16.msra.mxu0 %v1131
    %1367 = vmatprep.subr.bf16.mxu0 %v1136
    %1368 = vmatpush1.bf16.msra.mxu0 %v1135
    %1369 = vmatprep.subr.bf16.mxu0 %v1140
    %1370 = vmatpush1.bf16.msra.mxu0 %v1139
    %1371 = vmatprep.subr.bf16.mxu0 %v1144
    %1372 = vmatpush1.bf16.msra.mxu0 %v1143
    %1373 = vmatprep.subr.bf16.mxu0 %v1148
    %1374 = vmatpush1.bf16.msra.mxu0 %v1147
    %1375 = vmatprep.mubr.bf16.mxu0 %v572
    %1376 = vmatmul.mubr.bf16.gmra.mrb[0].mxu0 %v571
    %v1377 = vpop.f32.mrb[0].mxu0
    %v1378 = vadd.f32 0.0, %v1377
    %v1379 = vpop.f32.mrb[0].mxu0
    %v1380 = vadd.f32 0.0, %v1379
    %v1381 = vpop.f32.mrb[0].mxu0
    %v1382 = vpop.f32.mrb[0].mxu0
    %1383 = vdwg.mxu0
    %1384 = vmatprep.subr.bf16.mxu0 %v1152
    %1385 = vmatpush1.bf16.msra.mxu0 %v1151
    %1386 = vmatprep.subr.bf16.mxu0 %v1156
    %1387 = vmatpush1.bf16.msra.mxu0 %v1155
    %1388 = vmatprep.subr.bf16.mxu0 %v1160
    %1389 = vmatpush1.bf16.msra.mxu0 %v1159
    %1390 = vmatprep.subr.bf16.mxu0 %v1164
    %1391 = vmatpush1.bf16.msra.mxu0 %v1163
    %1392 = vmatprep.subr.bf16.mxu0 %v1168
    %1393 = vmatpush1.bf16.msra.mxu0 %v1167
    %1394 = vmatprep.subr.bf16.mxu0 %v1172
    %1395 = vmatpush1.bf16.msra.mxu0 %v1171
    %1396 = vmatprep.subr.bf16.mxu0 %v1176
    %1397 = vmatpush1.bf16.msra.mxu0 %v1175
    %1398 = vmatprep.subr.bf16.mxu0 %v1180
    %1399 = vmatpush1.bf16.msra.mxu0 %v1179
    %1400 = vmatprep.subr.bf16.mxu0 %v1184
    %1401 = vmatpush1.bf16.msra.mxu0 %v1183
    %1402 = vmatprep.subr.bf16.mxu0 %v1188
    %1403 = vmatpush1.bf16.msra.mxu0 %v1187
    %1404 = vmatprep.subr.bf16.mxu0 %v1192
    %1405 = vmatpush1.bf16.msra.mxu0 %v1191
    %1406 = vmatprep.subr.bf16.mxu0 %v1196
    %1407 = vmatpush1.bf16.msra.mxu0 %v1195
    %1408 = vmatprep.subr.bf16.mxu0 %v1200
    %1409 = vmatpush1.bf16.msra.mxu0 %v1199
    %1410 = vmatprep.subr.bf16.mxu0 %v1204
    %1411 = vmatpush1.bf16.msra.mxu0 %v1203
    %1412 = vmatprep.subr.bf16.mxu0 %v1208
    %1413 = vmatpush1.bf16.msra.mxu0 %v1207
    %1414 = vmatprep.subr.bf16.mxu0 %v1212
    %1415 = vmatpush1.bf16.msra.mxu0 %v1211
    %1416 = vmatprep.mubr.bf16.mxu0 %v574
    %1417 = vmatmul.mubr.bf16.gmra.mrb[0].mxu0 %v573
    %v1418 = vpop.f32.mrb[0].mxu0
    %v1419 = vadd.f32 %v1378, %v1418
    %v1420 = vpop.f32.mrb[0].mxu0
    %v1421 = vadd.f32 %v1380, %v1420
    %v1422 = vpop.f32.mrb[0].mxu0
    %v1423 = vpop.f32.mrb[0].mxu0
    %1424 = vdwg.mxu0
    %1425 = vmatprep.subr.bf16.mxu0 %v1090
    %1426 = vmatpush1.bf16.msra.mxu0 %v1089
    %1427 = vmatprep.subr.bf16.mxu0 %v1094
    %1428 = vmatpush1.bf16.msra.mxu0 %v1093
    %1429 = vmatprep.subr.bf16.mxu0 %v1098
    %1430 = vmatpush1.bf16.msra.mxu0 %v1097
    %1431 = vmatprep.subr.bf16.mxu0 %v1102
    %1432 = vmatpush1.bf16.msra.mxu0 %v1101
    %1433 = vmatprep.subr.bf16.mxu0 %v1106
    %1434 = vmatpush1.bf16.msra.mxu0 %v1105
    %1435 = vmatprep.subr.bf16.mxu0 %v1110
    %1436 = vmatpush1.bf16.msra.mxu0 %v1109
    %1437 = vmatprep.subr.bf16.mxu0 %v1114
    %1438 = vmatpush1.bf16.msra.mxu0 %v1113
    %1439 = vmatprep.subr.bf16.mxu0 %v1118
    %1440 = vmatpush1.bf16.msra.mxu0 %v1117
    %1441 = vmatprep.subr.bf16.mxu0 %v1122
    %1442 = vmatpush1.bf16.msra.mxu0 %v1121
    %1443 = vmatprep.subr.bf16.mxu0 %v1126
    %1444 = vmatpush1.bf16.msra.mxu0 %v1125
    %1445 = vmatprep.subr.bf16.mxu0 %v1130
    %1446 = vmatpush1.bf16.msra.mxu0 %v1129
    %1447 = vmatprep.subr.bf16.mxu0 %v1134
    %1448 = vmatpush1.bf16.msra.mxu0 %v1133
    %1449 = vmatprep.subr.bf16.mxu0 %v1138
    %1450 = vmatpush1.bf16.msra.mxu0 %v1137
    %1451 = vmatprep.subr.bf16.mxu0 %v1142
    %1452 = vmatpush1.bf16.msra.mxu0 %v1141
    %1453 = vmatprep.subr.bf16.mxu0 %v1146
    %1454 = vmatpush1.bf16.msra.mxu0 %v1145
    %1455 = vmatprep.subr.bf16.mxu0 %v1150
    %1456 = vmatpush1.bf16.msra.mxu0 %v1149
    %1457 = vmatprep.mubr.bf16.mxu0 %v572
    %1458 = vmatmul.mubr.bf16.gmra.mrb[0].mxu0 %v571
    %v1459 = vpop.f32.mrb[0].mxu0
    %v1460 = vadd.f32 0.0, %v1459
    %v1461 = vpop.f32.mrb[0].mxu0
    %v1462 = vadd.f32 0.0, %v1461
    %v1463 = vpop.f32.mrb[0].mxu0
    %v1464 = vpop.f32.mrb[0].mxu0
    %1465 = vdwg.mxu0
    %1466 = vmatprep.subr.bf16.mxu0 %v1154
    %1467 = vmatpush1.bf16.msra.mxu0 %v1153
    %1468 = vmatprep.subr.bf16.mxu0 %v1158
    %1469 = vmatpush1.bf16.msra.mxu0 %v1157
    %1470 = vmatprep.subr.bf16.mxu0 %v1162
    %1471 = vmatpush1.bf16.msra.mxu0 %v1161
    %1472 = vmatprep.subr.bf16.mxu0 %v1166
    %1473 = vmatpush1.bf16.msra.mxu0 %v1165
    %1474 = vmatprep.subr.bf16.mxu0 %v1170
    %1475 = vmatpush1.bf16.msra.mxu0 %v1169
    %1476 = vmatprep.subr.bf16.mxu0 %v1174
    %1477 = vmatpush1.bf16.msra.mxu0 %v1173
    %1478 = vmatprep.subr.bf16.mxu0 %v1178
    %1479 = vmatpush1.bf16.msra.mxu0 %v1177
    %1480 = vmatprep.subr.bf16.mxu0 %v1182
    %1481 = vmatpush1.bf16.msra.mxu0 %v1181
    %1482 = vmatprep.subr.bf16.mxu0 %v1186
    %1483 = vmatpush1.bf16.msra.mxu0 %v1185
    %1484 = vmatprep.subr.bf16.mxu0 %v1190
    %1485 = vmatpush1.bf16.msra.mxu0 %v1189
    %1486 = vmatprep.subr.bf16.mxu0 %v1194
    %1487 = vmatpush1.bf16.msra.mxu0 %v1193
    %1488 = vmatprep.subr.bf16.mxu0 %v1198
    %1489 = vmatpush1.bf16.msra.mxu0 %v1197
    %1490 = vmatprep.subr.bf16.mxu0 %v1202
    %1491 = vmatpush1.bf16.msra.mxu0 %v1201
    %1492 = vmatprep.subr.bf16.mxu0 %v1206
    %1493 = vmatpush1.bf16.msra.mxu0 %v1205
    %1494 = vmatprep.subr.bf16.mxu0 %v1210
    %1495 = vmatpush1.bf16.msra.mxu0 %v1209
    %1496 = vmatprep.subr.bf16.mxu0 %v1214
    %1497 = vmatpush1.bf16.msra.mxu0 %v1213
    %1498 = vmatprep.mubr.bf16.mxu0 %v574
    %1499 = vmatmul.mubr.bf16.gmra.mrb[0].mxu0 %v573
    %v1500 = vpop.f32.mrb[0].mxu0
    %v1501 = vadd.f32 %v1460, %v1500
    %v1502 = vpop.f32.mrb[0].mxu0
    %v1503 = vadd.f32 %v1462, %v1502
    %v1504 = vpop.f32.mrb[0].mxu0
    %v1505 = vpop.f32.mrb[0].mxu0
    %1506 = vdwg.mxu0
    %v1507 = vrot.slane %v1419, 4
    %v1508 = vadd.f32 %v1419, %v1507
    %v1509 = vrot.slane %v1508, 2
    %v1510 = vadd.f32 %v1508, %v1509
    %v1511 = vrot.slane %v1510, 1
    %v1512 = vadd.f32 %v1510, %v1511
    %v1513 = vrot.slane %v1421, 4
    %v1514 = vadd.f32 %v1421, %v1513
    %v1515 = vrot.slane %v1514, 2
    %v1516 = vadd.f32 %v1514, %v1515
    %v1517 = vrot.slane %v1516, 1
    %v1518 = vadd.f32 %v1516, %v1517
    %v1519 = vrot.slane %v1501, 4
    %v1520 = vadd.f32 %v1501, %v1519
    %v1521 = vrot.slane %v1520, 2
    %v1522 = vadd.f32 %v1520, %v1521
    %v1523 = vrot.slane %v1522, 1
    %v1524 = vadd.f32 %v1522, %v1523
    %v1525 = vrot.slane %v1503, 4
    %v1526 = vadd.f32 %v1503, %v1525
    %v1527 = vrot.slane %v1526, 2
    %v1528 = vadd.f32 %v1526, %v1527
    %v1529 = vrot.slane %v1528, 1
    %v1530 = vadd.f32 %v1528, %v1529
    %v1531 = vmul.f32 %v1512, 0.125
    %v1532 = vmul.f32 %v1518, 0.125
    %v1533 = vmul.f32 %v1524, 0.125
    %v1534 = vmul.f32 %v1530, 0.125
    %v1535 = vmul.f32 %v1419, %v1419
    %v1536 = vmul.f32 %v1421, %v1421
    %v1537 = vmul.f32 %v1501, %v1501
    %v1538 = vmul.f32 %v1503, %v1503
    %v1539 = vrot.slane %v1535, 4
    %v1540 = vadd.f32 %v1535, %v1539
    %v1541 = vrot.slane %v1540, 2
    %v1542 = vadd.f32 %v1540, %v1541
    %v1543 = vrot.slane %v1542, 1
    %v1544 = vadd.f32 %v1542, %v1543
    %v1545 = vrot.slane %v1536, 4
    %v1546 = vadd.f32 %v1536, %v1545
    %v1547 = vrot.slane %v1546, 2
    %v1548 = vadd.f32 %v1546, %v1547
    %v1549 = vrot.slane %v1548, 1
    %v1550 = vadd.f32 %v1548, %v1549
    %v1551 = vrot.slane %v1537, 4
    %v1552 = vadd.f32 %v1537, %v1551
    %v1553 = vrot.slane %v1552, 2
    %v1554 = vadd.f32 %v1552, %v1553
    %v1555 = vrot.slane %v1554, 1
    %v1556 = vadd.f32 %v1554, %v1555
    %v1557 = vrot.slane %v1538, 4
    %v1558 = vadd.f32 %v1538, %v1557
    %v1559 = vrot.slane %v1558, 2
    %v1560 = vadd.f32 %v1558, %v1559
    %v1561 = vrot.slane %v1560, 1
    %v1562 = vadd.f32 %v1560, %v1561
    %v1563 = vmul.f32 %v1544, 0.125
    %v1564 = vmul.f32 %v1550, 0.125
    %v1565 = vmul.f32 %v1556, 0.125
    %v1566 = vmul.f32 %v1562, 0.125
    %v1567 = vmul.f32 %v1531, %v1531
    %v1568 = vmul.f32 %v1532, %v1532
    %v1569 = vmul.f32 %v1533, %v1533
    %v1570 = vmul.f32 %v1534, %v1534
    %v1571 = vsub.f32 %v1563, %v1567
    %v1572 = vsub.f32 %v1564, %v1568
    %v1573 = vsub.f32 %v1565, %v1569
    %v1574 = vsub.f32 %v1566, %v1570
    %v1575 = vld [vmem:[%s6] sm:$0xf]
    %v1576 = vadd.f32 %v1571, 1e-05
    %v1577 = vadd.f32 %v1572, 1e-05
    %v1578 = vadd.f32 %v1573, 1e-05
    %v1579 = vadd.f32 %v1574, 1e-05
    %v1580 = vrsqrt.pop %v1576
    %v1581 = vrsqrt.pop %v1577
    %v1582 = vrsqrt.pop %v1578
    %v1583 = vrsqrt.pop %v1579
    %v1588 = vcombine.low %v1580, %v1581
    %v1589 = vcombine.low %v1582, %v1583
    %v1591 = vunpack.c.l.s4 1966171168
    %v1592 = vunpack.c.0.s8 %v1591
    %v1593 = vlaneseq
    %v1594 = vshrl.u32 %v1593, 7
    %v1595 = vsub.s32 %v1592, %v1594
    %v1596 = vrot.slane %v1588, %v1595
    %v1598 = vunpack.c.l.s4 1966171168
    %v1599 = vunpack.c.0.s8 %v1598
    %v1600 = vlaneseq
    %v1601 = vshrl.u32 %v1600, 7
    %v1602 = vsub.s32 %v1599, %v1601
    %v1603 = vrot.slane %v1589, %v1602
    %v1604 = vcombine.low %v1596, %v1603
    %v1606 = vunpack.c.l.s4 1966171168
    %v1607 = vunpack.c.0.s8 %v1606
    %v1608 = vlaneseq
    %v1609 = vshrl.u32 %v1608, 7
    %v1610 = vsub.s32 %v1607, %v1609
    %v1611 = vrot.slane %v1604, %v1610
    %v1613 = vmul.f32 %v1575, %v1611
    %v1614 = vld [vmem:[%s7] sm:$0xf]
    %v1616 = vlaneseq
    %v1617 = vshrl.u32 %v1616, 7
    %v1618 = vsub.s32 0, %v1617
    %v1619 = vrot.slane %v1613, %v1618
    %v1620 = vlaneseq
    %v1621 = vshrl.u32 %v1620, 7
    %v1622 = vsub.s32 1, %v1621
    %v1623 = vrot.slane %v1613, %v1622
    %v1624 = vlaneseq
    %v1625 = vshrl.u32 %v1624, 7
    %v1626 = vsub.s32 2, %v1625
    %v1627 = vrot.slane %v1613, %v1626
    %v1628 = vlaneseq
    %v1629 = vshrl.u32 %v1628, 7
    %v1630 = vsub.s32 3, %v1629
    %v1631 = vrot.slane %v1613, %v1630
    %v1636 = vmul.f32 %v1531, %v1619
    %v1637 = vmul.f32 %v1532, %v1623
    %v1638 = vmul.f32 %v1533, %v1627
    %v1639 = vmul.f32 %v1534, %v1631
    %v1644 = vcombine.low %v1636, %v1637
    %v1645 = vcombine.low %v1638, %v1639
    %v1647 = vunpack.c.l.s4 1966171168
    %v1648 = vunpack.c.0.s8 %v1647
    %v1649 = vlaneseq
    %v1650 = vshrl.u32 %v1649, 7
    %v1651 = vsub.s32 %v1648, %v1650
    %v1652 = vrot.slane %v1644, %v1651
    %v1654 = vunpack.c.l.s4 1966171168
    %v1655 = vunpack.c.0.s8 %v1654
    %v1656 = vlaneseq
    %v1657 = vshrl.u32 %v1656, 7
    %v1658 = vsub.s32 %v1655, %v1657
    %v1659 = vrot.slane %v1645, %v1658
    %v1660 = vcombine.low %v1652, %v1659
    %v1662 = vunpack.c.l.s4 1966171168
    %v1663 = vunpack.c.0.s8 %v1662
    %v1664 = vlaneseq
    %v1665 = vshrl.u32 %v1664, 7
    %v1666 = vsub.s32 %v1663, %v1665
    %v1667 = vrot.slane %v1660, %v1666
    %v1669 = vsub.f32 %v1614, %v1667
    %v1670 = vmul.f32 %v1419, %v1619
    %v1671 = vmul.f32 %v1421, %v1623
    %v1672 = vmul.f32 %v1501, %v1627
    %v1673 = vmul.f32 %v1503, %v1631
    %v1675 = vlaneseq
    %v1676 = vshrl.u32 %v1675, 7
    %v1677 = vsub.s32 0, %v1676
    %v1678 = vrot.slane %v1669, %v1677
    %v1679 = vlaneseq
    %v1680 = vshrl.u32 %v1679, 7
    %v1681 = vsub.s32 1, %v1680
    %v1682 = vrot.slane %v1669, %v1681
    %v1683 = vlaneseq
    %v1684 = vshrl.u32 %v1683, 7
    %v1685 = vsub.s32 2, %v1684
    %v1686 = vrot.slane %v1669, %v1685
    %v1687 = vlaneseq
    %v1688 = vshrl.u32 %v1687, 7
    %v1689 = vsub.s32 3, %v1688
    %v1690 = vrot.slane %v1669, %v1689
    %v1695 = vadd.f32 %v1670, %v1678
    %v1696 = vadd.f32 %v1671, %v1682
    %v1697 = vadd.f32 %v1672, %v1686
    %v1698 = vadd.f32 %v1673, %v1690
    %v1699 = vmul.f32 %v1695, 0.5
    %v1700 = vmul.f32 %v1696, 0.5
    %v1701 = vmul.f32 %v1697, 0.5
    %v1702 = vmul.f32 %v1698, 0.5
    %v1703 = vtanh.pop %v1699
    %v1704 = vtanh.pop %v1700
    %v1705 = vtanh.pop %v1701
    %v1706 = vtanh.pop %v1702
    %v1707 = vmul.f32 %v1703, 0.5
    %v1708 = vmul.f32 %v1704, 0.5
    %v1709 = vmul.f32 %v1705, 0.5
    %v1710 = vmul.f32 %v1706, 0.5
    %v1711 = vadd.f32 %v1707, 0.5
    %v1712 = vadd.f32 %v1708, 0.5
    %v1713 = vadd.f32 %v1709, 0.5
    %v1714 = vadd.f32 %v1710, 0.5
    %v1715 = vpack.c.bf16 %v1711, %v1711
    %v1716 = vpack.c.bf16 %v1712, %v1712
    %v1717 = vpack.c.bf16 %v1713, %v1713
    %v1718 = vpack.c.bf16 %v1714, %v1714
    %v1719 = vld [vmem:[#allocation7] sm:$0xf]
    %v1720 = vld [vmem:[#allocation7 + $0x4] sm:$0xf]
    %v1721 = vld [vmem:[#allocation7 + $0x8] sm:$0xf]
    %v1722 = vld [vmem:[#allocation7 + $0xc] sm:$0xf]
    %v1723 = vld [vmem:[#allocation7 + $0x10] sm:$0xf]
    %v1724 = vld [vmem:[#allocation7 + $0x14] sm:$0xf]
    %v1725 = vld [vmem:[#allocation7 + $0x18] sm:$0xf]
    %v1726 = vld [vmem:[#allocation7 + $0x1c] sm:$0xf]
    %v1727 = vld [vmem:[#allocation7 + $0x20] sm:$0xf]
    %v1728 = vld [vmem:[#allocation7 + $0x24] sm:$0xf]
    %v1729 = vld [vmem:[#allocation7 + $0x28] sm:$0xf]
    %v1730 = vld [vmem:[#allocation7 + $0x2c] sm:$0xf]
    %v1731 = vld [vmem:[#allocation7 + $0x30] sm:$0xf]
    %v1732 = vld [vmem:[#allocation7 + $0x34] sm:$0xf]
    %v1733 = vld [vmem:[#allocation7 + $0x38] sm:$0xf]
    %v1734 = vld [vmem:[#allocation7 + $0x3c] sm:$0xf]
    %v1735 = vld [vmem:[#allocation7 + $0x40] sm:$0xf]
    %v1736 = vld [vmem:[#allocation7 + $0x44] sm:$0xf]
    %v1737 = vld [vmem:[#allocation7 + $0x48] sm:$0xf]
    %v1738 = vld [vmem:[#allocation7 + $0x4c] sm:$0xf]
    %v1739 = vld [vmem:[#allocation7 + $0x50] sm:$0xf]
    %v1740 = vld [vmem:[#allocation7 + $0x54] sm:$0xf]
    %v1741 = vld [vmem:[#allocation7 + $0x58] sm:$0xf]
    %v1742 = vld [vmem:[#allocation7 + $0x5c] sm:$0xf]
    %v1743 = vld [vmem:[#allocation7 + $0x60] sm:$0xf]
    %v1744 = vld [vmem:[#allocation7 + $0x64] sm:$0xf]
    %v1745 = vld [vmem:[#allocation7 + $0x68] sm:$0xf]
    %v1746 = vld [vmem:[#allocation7 + $0x6c] sm:$0xf]
    %v1747 = vld [vmem:[#allocation7 + $0x70] sm:$0xf]
    %v1748 = vld [vmem:[#allocation7 + $0x74] sm:$0xf]
    %v1749 = vld [vmem:[#allocation7 + $0x78] sm:$0xf]
    %v1750 = vld [vmem:[#allocation7 + $0x7c] sm:$0xf]
    %v1751 = vld [vmem:[#allocation7 + $0x80] sm:$0xf]
    %v1752 = vld [vmem:[#allocation7 + $0x84] sm:$0xf]
    %v1753 = vld [vmem:[#allocation7 + $0x88] sm:$0xf]
    %v1754 = vld [vmem:[#allocation7 + $0x8c] sm:$0xf]
    %v1755 = vld [vmem:[#allocation7 + $0x90] sm:$0xf]
    %v1756 = vld [vmem:[#allocation7 + $0x94] sm:$0xf]
    %v1757 = vld [vmem:[#allocation7 + $0x98] sm:$0xf]
    %v1758 = vld [vmem:[#allocation7 + $0x9c] sm:$0xf]
    %v1759 = vld [vmem:[#allocation7 + $0xa0] sm:$0xf]
    %v1760 = vld [vmem:[#allocation7 + $0xa4] sm:$0xf]
    %v1761 = vld [vmem:[#allocation7 + $0xa8] sm:$0xf]
    %v1762 = vld [vmem:[#allocation7 + $0xac] sm:$0xf]
    %v1763 = vld [vmem:[#allocation7 + $0xb0] sm:$0xf]
    %v1764 = vld [vmem:[#allocation7 + $0xb4] sm:$0xf]
    %v1765 = vld [vmem:[#allocation7 + $0xb8] sm:$0xf]
    %v1766 = vld [vmem:[#allocation7 + $0xbc] sm:$0xf]
    %v1767 = vld [vmem:[#allocation7 + $0xc0] sm:$0xf]
    %v1768 = vld [vmem:[#allocation7 + $0xc4] sm:$0xf]
    %v1769 = vld [vmem:[#allocation7 + $0xc8] sm:$0xf]
    %v1770 = vld [vmem:[#allocation7 + $0xcc] sm:$0xf]
    %v1771 = vld [vmem:[#allocation7 + $0xd0] sm:$0xf]
    %v1772 = vld [vmem:[#allocation7 + $0xd4] sm:$0xf]
    %v1773 = vld [vmem:[#allocation7 + $0xd8] sm:$0xf]
    %v1774 = vld [vmem:[#allocation7 + $0xdc] sm:$0xf]
    %v1775 = vld [vmem:[#allocation7 + $0xe0] sm:$0xf]
    %v1776 = vld [vmem:[#allocation7 + $0xe4] sm:$0xf]
    %v1777 = vld [vmem:[#allocation7 + $0xe8] sm:$0xf]
    %v1778 = vld [vmem:[#allocation7 + $0xec] sm:$0xf]
    %v1779 = vld [vmem:[#allocation7 + $0xf0] sm:$0xf]
    %v1780 = vld [vmem:[#allocation7 + $0xf4] sm:$0xf]
    %v1781 = vld [vmem:[#allocation7 + $0xf8] sm:$0xf]
    %v1782 = vld [vmem:[#allocation7 + $0xfc] sm:$0xf]
    %v1783 = vld [vmem:[%s9] sm:$0x1]
    %v1785 = vlaneseq
    %v1786 = vshrl.u32 %v1785, 7
    %v1787 = vsub.s32 0, %v1786
    %v1788 = vrot.slane %v1783, %v1787
    %v1854 = vunpack.c.l.b16 %v1719
    %v1855 = vunpack.c.l.b16 %v1720
    %v1856 = vunpack.c.l.b16 %v1721
    %v1857 = vunpack.c.l.b16 %v1722
    %v1858 = vunpack.c.l.b16 %v1723
    %v1859 = vunpack.c.l.b16 %v1724
    %v1860 = vunpack.c.l.b16 %v1725
    %v1861 = vunpack.c.l.b16 %v1726
    %v1862 = vunpack.c.l.b16 %v1727
    %v1863 = vunpack.c.l.b16 %v1728
    %v1864 = vunpack.c.l.b16 %v1729
    %v1865 = vunpack.c.l.b16 %v1730
    %v1866 = vunpack.c.l.b16 %v1731
    %v1867 = vunpack.c.l.b16 %v1732
    %v1868 = vunpack.c.l.b16 %v1733
    %v1869 = vunpack.c.l.b16 %v1734
    %v1870 = vunpack.c.l.b16 %v1735
    %v1871 = vunpack.c.l.b16 %v1736
    %v1872 = vunpack.c.l.b16 %v1737
    %v1873 = vunpack.c.l.b16 %v1738
    %v1874 = vunpack.c.l.b16 %v1739
    %v1875 = vunpack.c.l.b16 %v1740
    %v1876 = vunpack.c.l.b16 %v1741
    %v1877 = vunpack.c.l.b16 %v1742
    %v1878 = vunpack.c.l.b16 %v1743
    %v1879 = vunpack.c.l.b16 %v1744
    %v1880 = vunpack.c.l.b16 %v1745
    %v1881 = vunpack.c.l.b16 %v1746
    %v1882 = vunpack.c.l.b16 %v1747
    %v1883 = vunpack.c.l.b16 %v1748
    %v1884 = vunpack.c.l.b16 %v1749
    %v1885 = vunpack.c.l.b16 %v1750
    %v1886 = vunpack.c.l.b16 %v1751
    %v1887 = vunpack.c.l.b16 %v1752
    %v1888 = vunpack.c.l.b16 %v1753
    %v1889 = vunpack.c.l.b16 %v1754
    %v1890 = vunpack.c.l.b16 %v1755
    %v1891 = vunpack.c.l.b16 %v1756
    %v1892 = vunpack.c.l.b16 %v1757
    %v1893 = vunpack.c.l.b16 %v1758
    %v1894 = vunpack.c.l.b16 %v1759
    %v1895 = vunpack.c.l.b16 %v1760
    %v1896 = vunpack.c.l.b16 %v1761
    %v1897 = vunpack.c.l.b16 %v1762
    %v1898 = vunpack.c.l.b16 %v1763
    %v1899 = vunpack.c.l.b16 %v1764
    %v1900 = vunpack.c.l.b16 %v1765
    %v1901 = vunpack.c.l.b16 %v1766
    %v1902 = vunpack.c.l.b16 %v1767
    %v1903 = vunpack.c.l.b16 %v1768
    %v1904 = vunpack.c.l.b16 %v1769
    %v1905 = vunpack.c.l.b16 %v1770
    %v1906 = vunpack.c.l.b16 %v1771
    %v1907 = vunpack.c.l.b16 %v1772
    %v1908 = vunpack.c.l.b16 %v1773
    %v1909 = vunpack.c.l.b16 %v1774
    %v1910 = vunpack.c.l.b16 %v1775
    %v1911 = vunpack.c.l.b16 %v1776
    %v1912 = vunpack.c.l.b16 %v1777
    %v1913 = vunpack.c.l.b16 %v1778
    %v1914 = vunpack.c.l.b16 %v1779
    %v1915 = vunpack.c.l.b16 %v1780
    %v1916 = vunpack.c.l.b16 %v1781
    %v1917 = vunpack.c.l.b16 %v1782
    %v1918 = vpack.c.b16 %v1855, %v1854
    %v1919 = vpack.c.b16 %v1857, %v1856
    %v1920 = vpack.c.b16 %v1859, %v1858
    %v1921 = vpack.c.b16 %v1861, %v1860
    %v1922 = vpack.c.b16 %v1863, %v1862
    %v1923 = vpack.c.b16 %v1865, %v1864
    %v1924 = vpack.c.b16 %v1867, %v1866
    %v1925 = vpack.c.b16 %v1869, %v1868
    %v1926 = vpack.c.b16 %v1871, %v1870
    %v1927 = vpack.c.b16 %v1873, %v1872
    %v1928 = vpack.c.b16 %v1875, %v1874
    %v1929 = vpack.c.b16 %v1877, %v1876
    %v1930 = vpack.c.b16 %v1879, %v1878
    %v1931 = vpack.c.b16 %v1881, %v1880
    %v1932 = vpack.c.b16 %v1883, %v1882
    %v1933 = vpack.c.b16 %v1885, %v1884
    %v1934 = vpack.c.b16 %v1887, %v1886
    %v1935 = vpack.c.b16 %v1889, %v1888
    %v1936 = vpack.c.b16 %v1891, %v1890
    %v1937 = vpack.c.b16 %v1893, %v1892
    %v1938 = vpack.c.b16 %v1895, %v1894
    %v1939 = vpack.c.b16 %v1897, %v1896
    %v1940 = vpack.c.b16 %v1899, %v1898
    %v1941 = vpack.c.b16 %v1901, %v1900
    %v1942 = vpack.c.b16 %v1903, %v1902
    %v1943 = vpack.c.b16 %v1905, %v1904
    %v1944 = vpack.c.b16 %v1907, %v1906
    %v1945 = vpack.c.b16 %v1909, %v1908
    %v1946 = vpack.c.b16 %v1911, %v1910
    %v1947 = vpack.c.b16 %v1913, %v1912
    %v1948 = vpack.c.b16 %v1915, %v1914
    %v1949 = vpack.c.b16 %v1917, %v1916
    %1982 = vmatprep.subr.bf16.mxu0 0
    %1983 = vmatpush1.bf16.msra.mxu0 %v1918
    %1984 = vmatprep.subr.bf16.mxu0 0
    %1985 = vmatpush1.bf16.msra.mxu0 %v1919
    %1986 = vmatprep.subr.bf16.mxu0 0
    %1987 = vmatpush1.bf16.msra.mxu0 %v1920
    %1988 = vmatprep.subr.bf16.mxu0 0
    %1989 = vmatpush1.bf16.msra.mxu0 %v1921
    %1990 = vmatprep.subr.bf16.mxu0 0
    %1991 = vmatpush1.bf16.msra.mxu0 %v1922
    %1992 = vmatprep.subr.bf16.mxu0 0
    %1993 = vmatpush1.bf16.msra.mxu0 %v1923
    %1994 = vmatprep.subr.bf16.mxu0 0
    %1995 = vmatpush1.bf16.msra.mxu0 %v1924
    %1996 = vmatprep.subr.bf16.mxu0 0
    %1997 = vmatpush1.bf16.msra.mxu0 %v1925
    %1998 = vmatprep.subr.bf16.mxu0 0
    %1999 = vmatpush1.bf16.msra.mxu0 %v1926
    %2000 = vmatprep.subr.bf16.mxu0 0
    %2001 = vmatpush1.bf16.msra.mxu0 %v1927
    %2002 = vmatprep.subr.bf16.mxu0 0
    %2003 = vmatpush1.bf16.msra.mxu0 %v1928
    %2004 = vmatprep.subr.bf16.mxu0 0
    %2005 = vmatpush1.bf16.msra.mxu0 %v1929
    %2006 = vmatprep.subr.bf16.mxu0 0
    %2007 = vmatpush1.bf16.msra.mxu0 %v1930
    %2008 = vmatprep.subr.bf16.mxu0 0
    %2009 = vmatpush1.bf16.msra.mxu0 %v1931
    %2010 = vmatprep.subr.bf16.mxu0 0
    %2011 = vmatpush1.bf16.msra.mxu0 %v1932
    %2012 = vmatprep.subr.bf16.mxu0 0
    %2013 = vmatpush1.bf16.msra.mxu0 %v1933
    %2014 = vmatprep.mubr.bf16.mxu0 %v1716
    %2015 = vmatmul.mubr.bf16.gmra.mrb[0].mxu0 %v1715
    %v2016 = vpop.f32.mrb[0].mxu0
    %v2017 = vadd.f32 %v1788, %v2016
    %v2018 = vpop.f32.mrb[0].mxu0
    %v2019 = vpop.f32.mrb[0].mxu0
    %v2020 = vpop.f32.mrb[0].mxu0
    %2021 = vdwg.mxu0
    %2022 = vmatprep.subr.bf16.mxu0 0
    %2023 = vmatpush1.bf16.msra.mxu0 %v1934
    %2024 = vmatprep.subr.bf16.mxu0 0
    %2025 = vmatpush1.bf16.msra.mxu0 %v1935
    %2026 = vmatprep.subr.bf16.mxu0 0
    %2027 = vmatpush1.bf16.msra.mxu0 %v1936
    %2028 = vmatprep.subr.bf16.mxu0 0
    %2029 = vmatpush1.bf16.msra.mxu0 %v1937
    %2030 = vmatprep.subr.bf16.mxu0 0
    %2031 = vmatpush1.bf16.msra.mxu0 %v1938
    %2032 = vmatprep.subr.bf16.mxu0 0
    %2033 = vmatpush1.bf16.msra.mxu0 %v1939
    %2034 = vmatprep.subr.bf16.mxu0 0
    %2035 = vmatpush1.bf16.msra.mxu0 %v1940
    %2036 = vmatprep.subr.bf16.mxu0 0
    %2037 = vmatpush1.bf16.msra.mxu0 %v1941
    %2038 = vmatprep.subr.bf16.mxu0 0
    %2039 = vmatpush1.bf16.msra.mxu0 %v1942
    %2040 = vmatprep.subr.bf16.mxu0 0
    %2041 = vmatpush1.bf16.msra.mxu0 %v1943
    %2042 = vmatprep.subr.bf16.mxu0 0
    %2043 = vmatpush1.bf16.msra.mxu0 %v1944
    %2044 = vmatprep.subr.bf16.mxu0 0
    %2045 = vmatpush1.bf16.msra.mxu0 %v1945
    %2046 = vmatprep.subr.bf16.mxu0 0
    %2047 = vmatpush1.bf16.msra.mxu0 %v1946
    %2048 = vmatprep.subr.bf16.mxu0 0
    %2049 = vmatpush1.bf16.msra.mxu0 %v1947
    %2050 = vmatprep.subr.bf16.mxu0 0
    %2051 = vmatpush1.bf16.msra.mxu0 %v1948
    %2052 = vmatprep.subr.bf16.mxu0 0
    %2053 = vmatpush1.bf16.msra.mxu0 %v1949
    %2054 = vmatprep.mubr.bf16.mxu0 %v1718
    %2055 = vmatmul.mubr.bf16.gmra.mrb[0].mxu0 %v1717
    %v2056 = vpop.f32.mrb[0].mxu0
    %v2057 = vadd.f32 %v2017, %v2056
    %v2058 = vpop.f32.mrb[0].mxu0
    %v2059 = vpop.f32.mrb[0].mxu0
    %v2060 = vpop.f32.mrb[0].mxu0
    %2061 = vdwg.mxu0
    %2062 = vst [vmem:[#allocation8] sm:$0xff] %v2057
    // Predicated region
    $region54: #{tpu_custom_call.1} parent=1 // pred_check
      _
    $region55: #{tpu_custom_call.1} parent=1 // pred_check_branch
      %2064 = sbr.rel (0) target = $region57
    $region56: #{tpu_custom_call.1} parent=1 // pred_region
      %s2066 = ssub.s32 128, 128
      %2067 = vsyncadd [#allocation4], %s2066
      %s2069 = sshll.u32 [#allocation8], 4
      %s2070 = int_to_ptr.vmem [resolvable:$true] %s2069
      %2072 = dma.vmem_to_hbm [thread:$0]  %s2070, 128, %s10, [#allocation4]
    $region57: #{tpu_custom_call.1} parent=1 // pred_fallthru
      _
    // Predicated region
    $region58: #{tpu_custom_call.1} parent=1 // pred_check
      _
    $region59: #{tpu_custom_call.1} parent=1 // pred_check_branch
      %2074 = sbr.rel (0) target = $region61
    $region60: #{tpu_custom_call.1} parent=1 // pred_region
      %2075 = dma.done [#allocation4], 128
    $region61: #{tpu_custom_call.1} parent=1 // pred_fallthru
      _
    %2076 = vsyncpa [#allocation3], 1
    %2077 = vsyncpa [#allocation6], 1
    %2078 = vsyncpa [#allocation4], 1

</llo_original>
